<compile_context>
chip_gen: v6e
topology: v6e:2x2x1
jax: 0.10.0
libtpu: 0.0.40
codegen_flags: <defaults>
</compile_context>

<pallas_src>
import functools

import jax
import jax.numpy as jnp
from jax.experimental import pallas as pl
from jax.experimental.pallas import tpu as pltpu

EPS = 1e-5

# MXU operand dtype. PyTorch runs this module in float32, so keep f32 for
# numerical parity; on v6e/v7x this can be switched to jnp.bfloat16 (the
# accumulation stays f32 via preferred_element_type) for MXU throughput.
MXU_DTYPE = jnp.float32


def _bn_relu(acc, fold, g_t, b_t, inv_cnt):
    """Training-mode BatchNorm + ReLU on a lane-folded (rows, W*C) activation.

    `fold` is the constant (W*C, W*C) 0/1 matrix fold[i, j] = (i % C == j % C):
    one matmul turns per-(w, c) column sums into per-channel sums already
    tiled back across the lanes, so the stats reduce correctly even though W
    and C are interleaved on the lane axis.  One pass (sum / sum-of-squares),
    fused scale/shift.
    """
    s_t = jnp.sum(jnp.dot(acc, fold, preferred_element_type=jnp.float32),
                  axis=0, keepdims=True) * inv_cnt            # per-channel mean
    q_t = jnp.sum(jnp.dot(acc * acc, fold, preferred_element_type=jnp.float32),
                  axis=0, keepdims=True) * inv_cnt            # per-channel E[x^2]
    var_t = q_t - s_t * s_t                                   # biased var (PyTorch)
    a_t = g_t * jax.lax.rsqrt(var_t + EPS)                    # per-channel scale
    b_eff = b_t - s_t * a_t                                   # per-channel shift
    return jnp.maximum(acc * a_t + b_eff, 0.0)


def _double_conv_kernel(x_ref, t1_ref, fold1_ref, g1_ref, b1_ref,
                        t2_ref, fold2_ref, g2_ref, b2_ref,
                        out_ref, xpad_ref, hpad_ref, *, inv_cnt):
    # x_ref    : (N, H, W*Cin)            unpadded input rows, channels minor
    # t1_ref   : (3, (W+1)*Cin,  W*Cmid)  banded conv1 weights (one per ky)
    # t2_ref   : (3, (W+1)*Cmid, W*Cout)  banded conv2 weights
    # fold*    : (W*C, W*C)               constant per-channel fold matrices
    # g*/b*    : (1, W*C)                 BN affine params tiled across lanes
    # out_ref  : (N*H, W*Cout)            lane-dense output rows
    # xpad_ref : (N, H+2, (W+1)*Cin)      VMEM scratch, padded input rows
    # hpad_ref : (N, H+2, (W+1)*Cmid)     VMEM scratch, padded hidden rows
    N, H, wcin = x_ref.shape
    wcmid = g1_ref.shape[1]
    wcout = out_ref.shape[1]
    kin = xpad_ref.shape[2]
    kmid = hpad_ref.shape[2]
    rows = N * H
    f32 = jnp.float32

    # ---- pad input into VMEM scratch; zero only the 1-wide halo ----------
    xpad_ref[:, 0:1, :] = jnp.zeros((N, 1, kin), f32)              # top halo row
    xpad_ref[:, H + 1:H + 2, :] = jnp.zeros((N, 1, kin), f32)      # bottom halo row
    xpad_ref[:, :, wcin:] = jnp.zeros((N, H + 2, kin - wcin), f32)  # right halo cols
    xpad_ref[:, 1:H + 1, 0:wcin] = x_ref[...].astype(f32)          # interior

    # ---- conv1: 3 banded matmuls (one per kernel row), K = (W+1)*Cin ------
    acc1 = jnp.zeros((rows, wcmid), f32)
    for ky in range(3):
        slab = xpad_ref[:, ky:ky + H, :].reshape(rows, kin)
        acc1 = acc1 + jnp.dot(slab.astype(MXU_DTYPE),
                              t1_ref[ky].astype(MXU_DTYPE),
                              preferred_element_type=f32)

    # ---- BatchNorm1 (batch stats) + ReLU ----------------------------------
    h1 = _bn_relu(acc1, fold1_ref[...], g1_ref[...], b1_ref[...], inv_cnt)

    # ---- pad hidden activations; zero only the halo ------------------------
    hpad_ref[:, 0:1, :] = jnp.zeros((N, 1, kmid), f32)
    hpad_ref[:, H + 1:H + 2, :] = jnp.zeros((N, 1, kmid), f32)
    hpad_ref[:, :, wcmid:] = jnp.zeros((N, H + 2, kmid - wcmid), f32)
    hpad_ref[:, 1:H + 1, 0:wcmid] = h1.reshape(N, H, wcmid)

    # ---- conv2: 3 banded matmuls, K = (W+1)*Cmid ---------------------------
    acc2 = jnp.zeros((rows, wcout), f32)
    for ky in range(3):
        slab = hpad_ref[:, ky:ky + H, :].reshape(rows, kmid)
        acc2 = acc2 + jnp.dot(slab.astype(MXU_DTYPE),
                              t2_ref[ky].astype(MXU_DTYPE),
                              preferred_element_type=f32)

    # ---- BatchNorm2 + ReLU; single lane-dense (N*H, W*Cout) store ----------
    out_ref[...] = _bn_relu(acc2, fold2_ref[...], g2_ref[...], b2_ref[...],
                            inv_cnt).astype(out_ref.dtype)


def _banded_weights(w_oihw, W):
    """OIHW 3x3 conv weight -> (3, (W+1)*Cin, W*Cout) block-Toeplitz matrices.

    Padded-row layout is [x[:, 0, :], ..., x[:, W-1, :], 0] (one zero channel
    group as the right halo; the left halo taps are simply absent from the
    band, which is equivalent to multiplying them by zero-padding).
    """
    Cout, Cin, KH, KW = w_oihw.shape
    w_hwio = jnp.transpose(w_oihw, (2, 3, 1, 0)).astype(jnp.float32)  # (3,3,Ci,Co)
    t = jnp.zeros((KH, (W + 1) * Cin, W * Cout), jnp.float32)
    for w in range(W):
        for kx in range(KW):
            p = w + kx - 1                      # input column group for this tap
            if p < 0:
                continue                        # left zero-pad tap: contributes 0
            t = t.at[:, p * Cin:(p + 1) * Cin,
                     w * Cout:(w + 1) * Cout].set(w_hwio[:, kx])
    return t


def _fold_matrix(W, C):
    idx = jnp.arange(W * C)
    return (idx[:, None] % C == idx[None, :] % C).astype(jnp.float32)


@jax.jit
def double_conv(x_nchw, w1_oihw, g1, b1, w2_oihw, g2, b2):
    """DoubleConv forward.  I/O is PyTorch NCHW / OIHW, float32."""
    N, Cin, H, W = x_nchw.shape
    Cmid = w1_oihw.shape[0]
    Cout = w2_oihw.shape[0]

    # Layout glue (pure XLA): NCHW -> channels-minor rows (N, H, W*Cin).
    x_rows = jnp.transpose(x_nchw, (0, 2, 3, 1)).reshape(N, H, W * Cin)
    x_rows = x_rows.astype(jnp.float32)

    t1 = _banded_weights(w1_oihw, W)        # (3, (W+1)*Cin,  W*Cmid)
    t2 = _banded_weights(w2_oihw, W)        # (3, (W+1)*Cmid, W*Cout)
    fold1 = _fold_matrix(W, Cmid)
    fold2 = _fold_matrix(W, Cout)
    g1_t = jnp.tile(g1.astype(jnp.float32), W)[None, :]
    b1_t = jnp.tile(b1.astype(jnp.float32), W)[None, :]
    g2_t = jnp.tile(g2.astype(jnp.float32), W)[None, :]
    b2_t = jnp.tile(b2.astype(jnp.float32), W)[None, :]

    kernel = functools.partial(_double_conv_kernel,
                               inv_cnt=1.0 / float(N * H * W))
    vmem = pl.BlockSpec(memory_space=pltpu.MemorySpace.VMEM)

    out2d = pl.pallas_call(
        kernel,
        out_shape=jax.ShapeDtypeStruct((N * H, W * Cout), jnp.float32),
        in_specs=[vmem] * 9,
        out_specs=vmem,
        scratch_shapes=[
            pltpu.VMEM((N, H + 2, (W + 1) * Cin), jnp.float32),   # padded input
            pltpu.VMEM((N, H + 2, (W + 1) * Cmid), jnp.float32),  # padded hidden
        ],
        compiler_params=pltpu.CompilerParams(
            vmem_limit_bytes=32 * 1024 * 1024),  # explicit budget (v7x: 64 MiB VMEM)
    )(x_rows, t1, fold1, g1_t, b1_t, t2, fold2, g2_t, b2_t)

    # Lane-dense slab -> NCHW (pure XLA layout glue).
    return jnp.transpose(out2d.reshape(N, H, W, Cout), (0, 3, 1, 2))


def _ref_double_conv(x, w1, g1, b1, w2, g2, b2):
    """Pure-JAX reference (NCHW, OIHW), BatchNorm training-mode batch stats."""
    def conv(x, w):
        return jax.lax.conv_general_dilated(
            x, w, window_strides=(1, 1), padding=((1, 1), (1, 1)),
            dimension_numbers=("NCHW", "OIHW", "NCHW"))

    def bn_relu(y, g, b):
        mean = jnp.mean(y, axis=(0, 2, 3), keepdims=True)
        var = jnp.mean((y - mean) ** 2, axis=(0, 2, 3), keepdims=True)
        yn = (y - mean) * jax.lax.rsqrt(var + EPS)
        yn = yn * g.reshape(1, -1, 1, 1) + b.reshape(1, -1, 1, 1)
        return jnp.maximum(yn, 0.0)

    h = bn_relu(conv(x, w1), g1, b1)
    return bn_relu(conv(h, w2), g2, b2)


if __name__ == "__main__":
    # DoubleConv(in_channels=4, out_channels=8) at small spatial size.
    N, Cin, Cout, H, W = 2, 4, 8, 16, 16

    key = jax.random.PRNGKey(0)
    k_x, k_w1, k_w2, k_g1, k_b1, k_g2, k_b2 = jax.random.split(key, 7)

    x = jax.random.normal(k_x, (N, Cin, H, W), jnp.float32)
    # Conv weights in PyTorch OIHW layout, bias=False.
    w1 = 0.1 * jax.random.normal(k_w1, (Cout, Cin, 3, 3), jnp.float32)
    w2 = 0.1 * jax.random.normal(k_w2, (Cout, Cout, 3, 3), jnp.float32)
    # BatchNorm affine params (perturbed from the 1/0 init to exercise them).
    g1 = 1.0 + 0.1 * jax.random.normal(k_g1, (Cout,), jnp.float32)
    b1 = 0.1 * jax.random.normal(k_b1, (Cout,), jnp.float32)
    g2 = 1.0 + 0.1 * jax.random.normal(k_g2, (Cout,), jnp.float32)
    b2 = 0.1 * jax.random.normal(k_b2, (Cout,), jnp.float32)

    out = jax.block_until_ready(double_conv(x, w1, g1, b1, w2, g2, b2))
    ref = jax.block_until_ready(_ref_double_conv(x, w1, g1, b1, w2, g2, b2))

    assert out.shape == (N, Cout, H, W), out.shape
    assert jnp.allclose(out, ref, rtol=1e-4, atol=2e-4), float(
        jnp.max(jnp.abs(out - ref)))

    print("KERNEL_OK")
</pallas_src>

<mosaic_0001>
module attributes {stable_mosaic.version = 11 : i64} {
  func.func @_double_conv_kernel(%arg0: memref<2x16x64xf32, #tpu.memory_space<vmem>>, %arg1: memref<3x68x128xf32, #tpu.memory_space<vmem>>, %arg2: memref<128x128xf32, #tpu.memory_space<vmem>>, %arg3: memref<1x128xf32, #tpu.memory_space<vmem>>, %arg4: memref<1x128xf32, #tpu.memory_space<vmem>>, %arg5: memref<3x136x128xf32, #tpu.memory_space<vmem>>, %arg6: memref<128x128xf32, #tpu.memory_space<vmem>>, %arg7: memref<1x128xf32, #tpu.memory_space<vmem>>, %arg8: memref<1x128xf32, #tpu.memory_space<vmem>>, %arg9: memref<32x128xf32, #tpu.memory_space<vmem>>, %arg10: memref<2x18x68xf32, #tpu.memory_space<vmem>>, %arg11: memref<2x18x136xf32, #tpu.memory_space<vmem>>) attributes {dimension_semantics = [], scalar_prefetch = 0 : i64, scratch_operands = 2 : i64, tpu.core_type = #tpu.core_type<tc>} {
    %cst = arith.constant 0.000000e+00 : f32
    %0 = vector.broadcast %cst : f32 to vector<2x1x68xf32>
    %c0 = arith.constant 0 : index
    %c0_0 = arith.constant 0 : index
    %c0_1 = arith.constant 0 : index
    %1 = vector.load %arg10[%c0, %c0_0, %c0_1] : memref<2x18x68xf32, #tpu.memory_space<vmem>>, vector<2x1x68xf32>
    tpu.vector_store %arg10[%c0, %c0_0, %c0_1], %0 {strides = array<i32>} : memref<2x18x68xf32, #tpu.memory_space<vmem>>, vector<2x1x68xf32>,
    %cst_2 = arith.constant 0.000000e+00 : f32
    %2 = vector.broadcast %cst_2 : f32 to vector<2x1x68xf32>
    %c0_3 = arith.constant 0 : index
    %c17 = arith.constant 17 : index
    %c0_4 = arith.constant 0 : index
    %3 = vector.load %arg10[%c0_3, %c17, %c0_4] : memref<2x18x68xf32, #tpu.memory_space<vmem>>, vector<2x1x68xf32>
    tpu.vector_store %arg10[%c0_3, %c17, %c0_4], %2 {strides = array<i32>} : memref<2x18x68xf32, #tpu.memory_space<vmem>>, vector<2x1x68xf32>,
    %cst_5 = arith.constant 0.000000e+00 : f32
    %4 = vector.broadcast %cst_5 : f32 to vector<2x18x4xf32>
    %c0_6 = arith.constant 0 : index
    %c0_7 = arith.constant 0 : index
    %c64 = arith.constant 64 : index
    %5 = vector.load %arg10[%c0_6, %c0_7, %c64] : memref<2x18x68xf32, #tpu.memory_space<vmem>>, vector<2x18x4xf32>
    tpu.vector_store %arg10[%c0_6, %c0_7, %c64], %4 {strides = array<i32>} : memref<2x18x68xf32, #tpu.memory_space<vmem>>, vector<2x18x4xf32>,
    %c0_8 = arith.constant 0 : index
    %c0_9 = arith.constant 0 : index
    %c0_10 = arith.constant 0 : index
    %6 = vector.load %arg0[%c0_8, %c0_9, %c0_10] : memref<2x16x64xf32, #tpu.memory_space<vmem>>, vector<2x16x64xf32>
    %c0_11 = arith.constant 0 : index
    %c1 = arith.constant 1 : index
    %c0_12 = arith.constant 0 : index
    %7 = vector.load %arg10[%c0_11, %c1, %c0_12] : memref<2x18x68xf32, #tpu.memory_space<vmem>>, vector<2x16x64xf32>
    tpu.vector_store %arg10[%c0_11, %c1, %c0_12], %6 {strides = array<i32>} : memref<2x18x68xf32, #tpu.memory_space<vmem>>, vector<2x16x64xf32>,
    %cst_13 = arith.constant 0.000000e+00 : f32
    %8 = vector.broadcast %cst_13 : f32 to vector<32x128xf32>
    %c0_14 = arith.constant 0 : index
    %c0_15 = arith.constant 0 : index
    %c0_16 = arith.constant 0 : index
    %9 = vector.load %arg10[%c0_14, %c0_15, %c0_16] : memref<2x18x68xf32, #tpu.memory_space<vmem>>, vector<2x16x68xf32>
    %10 = vector.shape_cast %9 : vector<2x16x68xf32> to vector<32x68xf32>
    %c0_17 = arith.constant 0 : index
    %c0_18 = arith.constant 0 : index
    %c0_19 = arith.constant 0 : index
    %11 = vector.load %arg1[%c0_17, %c0_18, %c0_19] : memref<3x68x128xf32, #tpu.memory_space<vmem>>, vector<1x68x128xf32>
    %12 = vector.shape_cast %11 : vector<1x68x128xf32> to vector<68x128xf32>
    %cst_20 = arith.constant dense<0.000000e+00> : vector<32x128xf32>
    %13 = tpu.matmul %10, %12, %cst_20 {dimension_numbers = #tpu.dot_dimension_numbers<[1], [0], [0], [1], [0, 0, 1, 1], [], []>} : vector<32x68xf32>, vector<68x128xf32>, vector<32x128xf32> -> vector<32x128xf32>
    %14 = arith.addf %8, %13 : vector<32x128xf32>
    %c0_21 = arith.constant 0 : index
    %c1_22 = arith.constant 1 : index
    %c0_23 = arith.constant 0 : index
    %15 = vector.load %arg10[%c0_21, %c1_22, %c0_23] : memref<2x18x68xf32, #tpu.memory_space<vmem>>, vector<2x16x68xf32>
    %16 = vector.shape_cast %15 : vector<2x16x68xf32> to vector<32x68xf32>
    %c1_24 = arith.constant 1 : index
    %c0_25 = arith.constant 0 : index
    %c0_26 = arith.constant 0 : index
    %17 = vector.load %arg1[%c1_24, %c0_25, %c0_26] : memref<3x68x128xf32, #tpu.memory_space<vmem>>, vector<1x68x128xf32>
    %18 = vector.shape_cast %17 : vector<1x68x128xf32> to vector<68x128xf32>
    %cst_27 = arith.constant dense<0.000000e+00> : vector<32x128xf32>
    %19 = tpu.matmul %16, %18, %cst_27 {dimension_numbers = #tpu.dot_dimension_numbers<[1], [0], [0], [1], [0, 0, 1, 1], [], []>} : vector<32x68xf32>, vector<68x128xf32>, vector<32x128xf32> -> vector<32x128xf32>
    %20 = arith.addf %14, %19 : vector<32x128xf32>
    %c0_28 = arith.constant 0 : index
    %c2 = arith.constant 2 : index
    %c0_29 = arith.constant 0 : index
    %21 = vector.load %arg10[%c0_28, %c2, %c0_29] : memref<2x18x68xf32, #tpu.memory_space<vmem>>, vector<2x16x68xf32>
    %22 = vector.shape_cast %21 : vector<2x16x68xf32> to vector<32x68xf32>
    %c2_30 = arith.constant 2 : index
    %c0_31 = arith.constant 0 : index
    %c0_32 = arith.constant 0 : index
    %23 = vector.load %arg1[%c2_30, %c0_31, %c0_32] : memref<3x68x128xf32, #tpu.memory_space<vmem>>, vector<1x68x128xf32>
    %24 = vector.shape_cast %23 : vector<1x68x128xf32> to vector<68x128xf32>
    %cst_33 = arith.constant dense<0.000000e+00> : vector<32x128xf32>
    %25 = tpu.matmul %22, %24, %cst_33 {dimension_numbers = #tpu.dot_dimension_numbers<[1], [0], [0], [1], [0, 0, 1, 1], [], []>} : vector<32x68xf32>, vector<68x128xf32>, vector<32x128xf32> -> vector<32x128xf32>
    %26 = arith.addf %20, %25 : vector<32x128xf32>
    %c0_34 = arith.constant 0 : index
    %c0_35 = arith.constant 0 : index
    %27 = vector.load %arg2[%c0_34, %c0_35] : memref<128x128xf32, #tpu.memory_space<vmem>>, vector<128x128xf32>
    %c0_36 = arith.constant 0 : index
    %c0_37 = arith.constant 0 : index
    %28 = vector.load %arg3[%c0_36, %c0_37] : memref<1x128xf32, #tpu.memory_space<vmem>>, vector<1x128xf32>
    %c0_38 = arith.constant 0 : index
    %c0_39 = arith.constant 0 : index
    %29 = vector.load %arg4[%c0_38, %c0_39] : memref<1x128xf32, #tpu.memory_space<vmem>>, vector<1x128xf32>
    %cst_40 = arith.constant dense<0.000000e+00> : vector<32x128xf32>
    %30 = tpu.matmul %26, %27, %cst_40 {dimension_numbers = #tpu.dot_dimension_numbers<[1], [0], [0], [1], [0, 0, 1, 1], [], []>} : vector<32x128xf32>, vector<128x128xf32>, vector<32x128xf32> -> vector<32x128xf32>
    %cst_41 = arith.constant dense<0.000000e+00> : vector<128xf32>
    %31 = vector.multi_reduction <add>, %30, %cst_41 [0] : vector<32x128xf32> to vector<128xf32>
    %32 = vector.shape_cast %31 : vector<128xf32> to vector<1x128xf32>
    %cst_42 = arith.constant 0.001953125 : f32
    %33 = vector.broadcast %cst_42 : f32 to vector<1x128xf32>
    %34 = arith.mulf %32, %33 : vector<1x128xf32>
    %35 = arith.mulf %26, %26 : vector<32x128xf32>
    %cst_43 = arith.constant dense<0.000000e+00> : vector<32x128xf32>
    %36 = tpu.matmul %35, %27, %cst_43 {dimension_numbers = #tpu.dot_dimension_numbers<[1], [0], [0], [1], [0, 0, 1, 1], [], []>} : vector<32x128xf32>, vector<128x128xf32>, vector<32x128xf32> -> vector<32x128xf32>
    %cst_44 = arith.constant dense<0.000000e+00> : vector<128xf32>
    %37 = vector.multi_reduction <add>, %36, %cst_44 [0] : vector<32x128xf32> to vector<128xf32>
    %38 = vector.shape_cast %37 : vector<128xf32> to vector<1x128xf32>
    %cst_45 = arith.constant 0.001953125 : f32
    %39 = vector.broadcast %cst_45 : f32 to vector<1x128xf32>
    %40 = arith.mulf %38, %39 : vector<1x128xf32>
    %41 = arith.mulf %34, %34 : vector<1x128xf32>
    %42 = arith.subf %40, %41 : vector<1x128xf32>
    %cst_46 = arith.constant 9.99999974E-6 : f32
    %43 = vector.broadcast %cst_46 : f32 to vector<1x128xf32>
    %44 = arith.addf %42, %43 : vector<1x128xf32>
    %45 = math.rsqrt %44 : vector<1x128xf32>
    %46 = arith.mulf %28, %45 : vector<1x128xf32>
    %47 = arith.mulf %34, %46 : vector<1x128xf32>
    %48 = arith.subf %29, %47 : vector<1x128xf32>
    %49 = vector.broadcast %46 : vector<1x128xf32> to vector<32x128xf32>
    %50 = arith.mulf %26, %49 : vector<32x128xf32>
    %51 = vector.broadcast %48 : vector<1x128xf32> to vector<32x128xf32>
    %52 = arith.addf %50, %51 : vector<32x128xf32>
    %cst_47 = arith.constant 0.000000e+00 : f32
    %53 = vector.broadcast %cst_47 : f32 to vector<32x128xf32>
    %54 = arith.maximumf %52, %53 : vector<32x128xf32>
    %cst_48 = arith.constant 0.000000e+00 : f32
    %55 = vector.broadcast %cst_48 : f32 to vector<2x1x136xf32>
    %c0_49 = arith.constant 0 : index
    %c0_50 = arith.constant 0 : index
    %c0_51 = arith.constant 0 : index
    %56 = vector.load %arg11[%c0_49, %c0_50, %c0_51] : memref<2x18x136xf32, #tpu.memory_space<vmem>>, vector<2x1x136xf32>
    tpu.vector_store %arg11[%c0_49, %c0_50, %c0_51], %55 {strides = array<i32>} : memref<2x18x136xf32, #tpu.memory_space<vmem>>, vector<2x1x136xf32>,
    %cst_52 = arith.constant 0.000000e+00 : f32
    %57 = vector.broadcast %cst_52 : f32 to vector<2x1x136xf32>
    %c0_53 = arith.constant 0 : index
    %c17_54 = arith.constant 17 : index
    %c0_55 = arith.constant 0 : index
    %58 = vector.load %arg11[%c0_53, %c17_54, %c0_55] : memref<2x18x136xf32, #tpu.memory_space<vmem>>, vector<2x1x136xf32>
    tpu.vector_store %arg11[%c0_53, %c17_54, %c0_55], %57 {strides = array<i32>} : memref<2x18x136xf32, #tpu.memory_space<vmem>>, vector<2x1x136xf32>,
    %cst_56 = arith.constant 0.000000e+00 : f32
    %59 = vector.broadcast %cst_56 : f32 to vector<2x18x8xf32>
    %c0_57 = arith.constant 0 : index
    %c0_58 = arith.constant 0 : index
    %c128 = arith.constant 128 : index
    %60 = vector.load %arg11[%c0_57, %c0_58, %c128] : memref<2x18x136xf32, #tpu.memory_space<vmem>>, vector<2x18x8xf32>
    tpu.vector_store %arg11[%c0_57, %c0_58, %c128], %59 {strides = array<i32>} : memref<2x18x136xf32, #tpu.memory_space<vmem>>, vector<2x18x8xf32>,
    %61 = vector.shape_cast %54 : vector<32x128xf32> to vector<2x16x128xf32>
    %c0_59 = arith.constant 0 : index
    %c1_60 = arith.constant 1 : index
    %c0_61 = arith.constant 0 : index
    %62 = vector.load %arg11[%c0_59, %c1_60, %c0_61] : memref<2x18x136xf32, #tpu.memory_space<vmem>>, vector<2x16x128xf32>
    tpu.vector_store %arg11[%c0_59, %c1_60, %c0_61], %61 {strides = array<i32>} : memref<2x18x136xf32, #tpu.memory_space<vmem>>, vector<2x16x128xf32>,
    %cst_62 = arith.constant 0.000000e+00 : f32
    %63 = vector.broadcast %cst_62 : f32 to vector<32x128xf32>
    %c0_63 = arith.constant 0 : index
    %c0_64 = arith.constant 0 : index
    %c0_65 = arith.constant 0 : index
    %64 = vector.load %arg11[%c0_63, %c0_64, %c0_65] : memref<2x18x136xf32, #tpu.memory_space<vmem>>, vector<2x16x136xf32>
    %65 = vector.shape_cast %64 : vector<2x16x136xf32> to vector<32x136xf32>
    %c0_66 = arith.constant 0 : index
    %c0_67 = arith.constant 0 : index
    %c0_68 = arith.constant 0 : index
    %66 = vector.load %arg5[%c0_66, %c0_67, %c0_68] : memref<3x136x128xf32, #tpu.memory_space<vmem>>, vector<1x136x128xf32>
    %67 = vector.shape_cast %66 : vector<1x136x128xf32> to vector<136x128xf32>
    %cst_69 = arith.constant dense<0.000000e+00> : vector<32x128xf32>
    %68 = tpu.matmul %65, %67, %cst_69 {dimension_numbers = #tpu.dot_dimension_numbers<[1], [0], [0], [1], [0, 0, 1, 1], [], []>} : vector<32x136xf32>, vector<136x128xf32>, vector<32x128xf32> -> vector<32x128xf32>
    %69 = arith.addf %63, %68 : vector<32x128xf32>
    %c0_70 = arith.constant 0 : index
    %c1_71 = arith.constant 1 : index
    %c0_72 = arith.constant 0 : index
    %70 = vector.load %arg11[%c0_70, %c1_71, %c0_72] : memref<2x18x136xf32, #tpu.memory_space<vmem>>, vector<2x16x136xf32>
    %71 = vector.shape_cast %70 : vector<2x16x136xf32> to vector<32x136xf32>
    %c1_73 = arith.constant 1 : index
    %c0_74 = arith.constant 0 : index
    %c0_75 = arith.constant 0 : index
    %72 = vector.load %arg5[%c1_73, %c0_74, %c0_75] : memref<3x136x128xf32, #tpu.memory_space<vmem>>, vector<1x136x128xf32>
    %73 = vector.shape_cast %72 : vector<1x136x128xf32> to vector<136x128xf32>
    %cst_76 = arith.constant dense<0.000000e+00> : vector<32x128xf32>
    %74 = tpu.matmul %71, %73, %cst_76 {dimension_numbers = #tpu.dot_dimension_numbers<[1], [0], [0], [1], [0, 0, 1, 1], [], []>} : vector<32x136xf32>, vector<136x128xf32>, vector<32x128xf32> -> vector<32x128xf32>
    %75 = arith.addf %69, %74 : vector<32x128xf32>
    %c0_77 = arith.constant 0 : index
    %c2_78 = arith.constant 2 : index
    %c0_79 = arith.constant 0 : index
    %76 = vector.load %arg11[%c0_77, %c2_78, %c0_79] : memref<2x18x136xf32, #tpu.memory_space<vmem>>, vector<2x16x136xf32>
    %77 = vector.shape_cast %76 : vector<2x16x136xf32> to vector<32x136xf32>
    %c2_80 = arith.constant 2 : index
    %c0_81 = arith.constant 0 : index
    %c0_82 = arith.constant 0 : index
    %78 = vector.load %arg5[%c2_80, %c0_81, %c0_82] : memref<3x136x128xf32, #tpu.memory_space<vmem>>, vector<1x136x128xf32>
    %79 = vector.shape_cast %78 : vector<1x136x128xf32> to vector<136x128xf32>
    %cst_83 = arith.constant dense<0.000000e+00> : vector<32x128xf32>
    %80 = tpu.matmul %77, %79, %cst_83 {dimension_numbers = #tpu.dot_dimension_numbers<[1], [0], [0], [1], [0, 0, 1, 1], [], []>} : vector<32x136xf32>, vector<136x128xf32>, vector<32x128xf32> -> vector<32x128xf32>
    %81 = arith.addf %75, %80 : vector<32x128xf32>
    %c0_84 = arith.constant 0 : index
    %c0_85 = arith.constant 0 : index
    %82 = vector.load %arg6[%c0_84, %c0_85] : memref<128x128xf32, #tpu.memory_space<vmem>>, vector<128x128xf32>
    %c0_86 = arith.constant 0 : index
    %c0_87 = arith.constant 0 : index
    %83 = vector.load %arg7[%c0_86, %c0_87] : memref<1x128xf32, #tpu.memory_space<vmem>>, vector<1x128xf32>
    %c0_88 = arith.constant 0 : index
    %c0_89 = arith.constant 0 : index
    %84 = vector.load %arg8[%c0_88, %c0_89] : memref<1x128xf32, #tpu.memory_space<vmem>>, vector<1x128xf32>
    %cst_90 = arith.constant dense<0.000000e+00> : vector<32x128xf32>
    %85 = tpu.matmul %81, %82, %cst_90 {dimension_numbers = #tpu.dot_dimension_numbers<[1], [0], [0], [1], [0, 0, 1, 1], [], []>} : vector<32x128xf32>, vector<128x128xf32>, vector<32x128xf32> -> vector<32x128xf32>
    %cst_91 = arith.constant dense<0.000000e+00> : vector<128xf32>
    %86 = vector.multi_reduction <add>, %85, %cst_91 [0] : vector<32x128xf32> to vector<128xf32>
    %87 = vector.shape_cast %86 : vector<128xf32> to vector<1x128xf32>
    %cst_92 = arith.constant 0.001953125 : f32
    %88 = vector.broadcast %cst_92 : f32 to vector<1x128xf32>
    %89 = arith.mulf %87, %88 : vector<1x128xf32>
    %90 = arith.mulf %81, %81 : vector<32x128xf32>
    %cst_93 = arith.constant dense<0.000000e+00> : vector<32x128xf32>
    %91 = tpu.matmul %90, %82, %cst_93 {dimension_numbers = #tpu.dot_dimension_numbers<[1], [0], [0], [1], [0, 0, 1, 1], [], []>} : vector<32x128xf32>, vector<128x128xf32>, vector<32x128xf32> -> vector<32x128xf32>
    %cst_94 = arith.constant dense<0.000000e+00> : vector<128xf32>
    %92 = vector.multi_reduction <add>, %91, %cst_94 [0] : vector<32x128xf32> to vector<128xf32>
    %93 = vector.shape_cast %92 : vector<128xf32> to vector<1x128xf32>
    %cst_95 = arith.constant 0.001953125 : f32
    %94 = vector.broadcast %cst_95 : f32 to vector<1x128xf32>
    %95 = arith.mulf %93, %94 : vector<1x128xf32>
    %96 = arith.mulf %89, %89 : vector<1x128xf32>
    %97 = arith.subf %95, %96 : vector<1x128xf32>
    %cst_96 = arith.constant 9.99999974E-6 : f32
    %98 = vector.broadcast %cst_96 : f32 to vector<1x128xf32>
    %99 = arith.addf %97, %98 : vector<1x128xf32>
    %100 = math.rsqrt %99 : vector<1x128xf32>
    %101 = arith.mulf %83, %100 : vector<1x128xf32>
    %102 = arith.mulf %89, %101 : vector<1x128xf32>
    %103 = arith.subf %84, %102 : vector<1x128xf32>
    %104 = vector.broadcast %101 : vector<1x128xf32> to vector<32x128xf32>
    %105 = arith.mulf %81, %104 : vector<32x128xf32>
    %106 = vector.broadcast %103 : vector<1x128xf32> to vector<32x128xf32>
    %107 = arith.addf %105, %106 : vector<32x128xf32>
    %cst_97 = arith.constant 0.000000e+00 : f32
    %108 = vector.broadcast %cst_97 : f32 to vector<32x128xf32>
    %109 = arith.maximumf %107, %108 : vector<32x128xf32>
    %c0_98 = arith.constant 0 : index
    %c0_99 = arith.constant 0 : index
    %110 = vector.load %arg9[%c0_98, %c0_99] : memref<32x128xf32, #tpu.memory_space<vmem>>, vector<32x128xf32>
    tpu.vector_store %arg9[%c0_98, %c0_99], %109 {strides = array<i32>} : memref<32x128xf32, #tpu.memory_space<vmem>>, vector<32x128xf32>,
    return
  }
}

</mosaic_0001>

<llo_original>
// kernel: tile.23
$region0: #{tile.23}
  #allocation0 [shape = 's32[1]{0}', space=sflag, size = 0x4, scoped, tag = 'scoped memory for tile.23']
  %s0 = inlined_call_operand.vmem [shape: f32[8], index: 0, kind: input, shape index: {}]
  %s1 = inlined_call_operand.vmem [shape: f32[16,8], index: 1, kind: output, shape index: {}]
  // Predicated region
  $region2: #{tile.23} parent=0 // pred_check
    _
  $region3: #{tile.23} parent=0 // pred_check_branch
    %3 = sbr.rel (0) target = $region5
  $region4: #{tile.23} parent=0 // pred_region
    _
  $region5: #{tile.23} parent=0 // pred_fallthru
    _
  %v4 = vld [vmem:[%s0] ss:$0 sm:$0xff]
  %5 = vst [vmem:[%s1] sm:$0xff] %v4
  %s6 = scalar_lea.vmem %s1, 8
  %7 = vst [vmem:[%s6] sm:$0xff] %v4

// kernel: tile.24
$region0: #{tile.24}
  %s0 = inlined_call_operand.vmem [shape: f32[16,8], index: 0, kind: input, shape index: {}]
  %s1 = inlined_call_operand.vmem [shape: f32[1,128], index: 1, kind: output, shape index: {}]
  $region1: #{tile.24} parent=0
    #allocation0 [shape = 'u8[4096]{0}', space=vmem, size = 0x1000, scoped, tag = 'scoped mem for output reshape']
    %v2 = vld [vmem:[%s0] sm:$0x1]
    %vm3 = vcmask 64512
    %4 = vst.msk [vmem:[#allocation0] sm:$0x1] %vm3, %v2
    %s5 = scalar_lea.vmem %s0, 15
    %v6 = vld [vmem:[%s5] sm:$0x1]
    %7 = vrot.lane.b32.xlu0 %v6, 120
    %v8 = vpop.permute.xlu0 %7
    %vm9 = vcmask 1048512
    %10 = vst.msk [vmem:[#allocation0] sm:$0x1] %vm9, %v8
    %s11 = scalar_lea.vmem %s0, 14
    %v12 = vld [vmem:[%s11] sm:$0x1]
    %13 = vrot.lane.b32.xlu0 %v12, 112
    %v14 = vpop.permute.xlu0 %13
    %vm15 = vcmask 982912
    %16 = vst.msk [vmem:[#allocation0] sm:$0x1] %vm15, %v14
    %s17 = scalar_lea.vmem %s0, 13
    %v18 = vld [vmem:[%s17] sm:$0x1]
    %19 = vrot.lane.b32.xlu0 %v18, 104
    %v20 = vpop.permute.xlu0 %19
    %vm21 = vcmask 917312
    %22 = vst.msk [vmem:[#allocation0] sm:$0x1] %vm21, %v20
    %s23 = scalar_lea.vmem %s0, 12
    %v24 = vld [vmem:[%s23] sm:$0x1]
    %25 = vrot.lane.b32.xlu0 %v24, 96
    %v26 = vpop.permute.xlu0 %25
    %vm27 = vcmask 851712
    %28 = vst.msk [vmem:[#allocation0] sm:$0x1] %vm27, %v26
    %s29 = scalar_lea.vmem %s0, 11
    %v30 = vld [vmem:[%s29] sm:$0x1]
    %31 = vrot.lane.b32.xlu0 %v30, 88
    %v32 = vpop.permute.xlu0 %31
    %vm33 = vcmask 786112
    %34 = vst.msk [vmem:[#allocation0] sm:$0x1] %vm33, %v32
    %s35 = scalar_lea.vmem %s0, 10
    %v36 = vld [vmem:[%s35] sm:$0x1]
    %37 = vrot.lane.b32.xlu0 %v36, 80
    %v38 = vpop.permute.xlu0 %37
    %vm39 = vcmask 720512
    %40 = vst.msk [vmem:[#allocation0] sm:$0x1] %vm39, %v38
    %s41 = scalar_lea.vmem %s0, 9
    %v42 = vld [vmem:[%s41] sm:$0x1]
    %43 = vrot.lane.b32.xlu0 %v42, 72
    %v44 = vpop.permute.xlu0 %43
    %vm45 = vcmask 654912
    %46 = vst.msk [vmem:[#allocation0] sm:$0x1] %vm45, %v44
    %s47 = scalar_lea.vmem %s0, 8
    %v48 = vld [vmem:[%s47] sm:$0x1]
    %49 = vrot.lane.b32.xlu0 %v48, 64
    %v50 = vpop.permute.xlu0 %49
    %vm51 = vcmask 589312
    %52 = vst.msk [vmem:[#allocation0] sm:$0x1] %vm51, %v50
    %s53 = scalar_lea.vmem %s0, 7
    %v54 = vld [vmem:[%s53] sm:$0x1]
    %55 = vrot.lane.b32.xlu0 %v54, 56
    %v56 = vpop.permute.xlu0 %55
    %vm57 = vcmask 523712
    %58 = vst.msk [vmem:[#allocation0] sm:$0x1] %vm57, %v56
    %s59 = scalar_lea.vmem %s0, 6
    %v60 = vld [vmem:[%s59] sm:$0x1]
    %61 = vrot.lane.b32.xlu0 %v60, 48
    %v62 = vpop.permute.xlu0 %61
    %vm63 = vcmask 458112
    %64 = vst.msk [vmem:[#allocation0] sm:$0x1] %vm63, %v62
    %s65 = scalar_lea.vmem %s0, 5
    %v66 = vld [vmem:[%s65] sm:$0x1]
    %67 = vrot.lane.b32.xlu0 %v66, 40
    %v68 = vpop.permute.xlu0 %67
    %vm69 = vcmask 392512
    %70 = vst.msk [vmem:[#allocation0] sm:$0x1] %vm69, %v68
    %s71 = scalar_lea.vmem %s0, 4
    %v72 = vld [vmem:[%s71] sm:$0x1]
    %73 = vrot.lane.b32.xlu0 %v72, 32
    %v74 = vpop.permute.xlu0 %73
    %vm75 = vcmask 326912
    %76 = vst.msk [vmem:[#allocation0] sm:$0x1] %vm75, %v74
    %s77 = scalar_lea.vmem %s0, 3
    %v78 = vld [vmem:[%s77] sm:$0x1]
    %79 = vrot.lane.b32.xlu0 %v78, 24
    %v80 = vpop.permute.xlu0 %79
    %vm81 = vcmask 261312
    %82 = vst.msk [vmem:[#allocation0] sm:$0x1] %vm81, %v80
    %s83 = scalar_lea.vmem %s0, 2
    %v84 = vld [vmem:[%s83] sm:$0x1]
    %85 = vrot.lane.b32.xlu0 %v84, 16
    %v86 = vpop.permute.xlu0 %85
    %vm87 = vcmask 195712
    %88 = vst.msk [vmem:[#allocation0] sm:$0x1] %vm87, %v86
    %s89 = scalar_lea.vmem %s0, 1
    %v90 = vld [vmem:[%s89] sm:$0x1]
    %91 = vrot.lane.b32.xlu0 %v90, 8
    %v92 = vpop.permute.xlu0 %91
    %vm93 = vcmask 130112
    %94 = vst.msk [vmem:[#allocation0] sm:$0x1] %vm93, %v92
    %s96 = sshll.u32 1, 1
    %s97 = ssub.s32 %s96, 1
    %v99 = vld [vmem:[#allocation0] sm:%s97]
    %s100 = sshll.u32 1, 1
    %s101 = ssub.s32 %s100, 1
    %102 = vst [vmem:[%s1] sm:%s101] %v99

// kernel: double_conv.1
$region0: #{double_conv.1}
  #allocation0 [shape = 'u32[]', space=smem, size = 0x4, offset = 0x4, fixed_abs, tag = 'smem constant byte address 0x4 - core index']
  #allocation1 [shape = 'u32[144,128]{1,0:T(1,128)}', space=vmem, size = 0x12000, scoped, tag = 'internal scratch']
  #allocation2 [shape = 'f32[2,18,68]{2,1,0:T(8,128)}', space=vmem, size = 0x6000, scoped, tag = 'scratch operand']
  #allocation3 [shape = 'f32[2,18,136]{2,1,0:T(8,128)}', space=vmem, size = 0xc000, scoped, tag = 'scratch operand']
  %s0 = inlined_call_operand.vmem [shape: f32[2,16,64], index: 0, kind: input, shape index: {}]
  %s1 = inlined_call_operand.vmem [shape: f32[3,68,128], index: 1, kind: input, shape index: {}]
  %s2 = inlined_call_operand.vmem [shape: f32[128,128], index: 2, kind: input, shape index: {}, may-alias: {2,6}]
  %s3 = inlined_call_operand.vmem [shape: f32[1,128], index: 3, kind: input, shape index: {}]
  %s4 = inlined_call_operand.vmem [shape: f32[1,128], index: 4, kind: input, shape index: {}]
  %s5 = inlined_call_operand.vmem [shape: f32[3,136,128], index: 5, kind: input, shape index: {}]
  %s6 = inlined_call_operand.vmem [shape: f32[128,128], index: 6, kind: input, shape index: {}, may-alias: {2,6}]
  %s7 = inlined_call_operand.vmem [shape: f32[1,128], index: 7, kind: input, shape index: {}]
  %s8 = inlined_call_operand.vmem [shape: f32[1,128], index: 8, kind: input, shape index: {}]
  %s9 = inlined_call_operand.vmem [shape: f32[32,128], index: 9, kind: output, shape index: {}]
  %s10 = sld [smem:[#allocation0]]
  $region46: #{double_conv.1} parent=0
    _
  %s12 = ssub.s32 1, %s10
  %s13 = scalar_select 0, %s12, %s10
  // Predicated region
  $region2: #{double_conv.1} parent=0 // pred_check
    _
  $region3: #{double_conv.1} parent=0 // pred_check_branch
    %15 = sbr.rel (0) target = $region5
  $region4: #{double_conv.1} parent=0 // pred_region
    _
  $region5: #{double_conv.1} parent=0 // pred_fallthru
    _
  // Predicated region
  $region6: #{double_conv.1} parent=0 // pred_check
    _
  $region7: #{double_conv.1} parent=0 // pred_check_branch
    %17 = sbr.rel (0) target = $region9
  $region8: #{double_conv.1} parent=0 // pred_region
    _
  $region9: #{double_conv.1} parent=0 // pred_fallthru
    _
  // Predicated region
  $region10: #{double_conv.1} parent=0 // pred_check
    _
  $region11: #{double_conv.1} parent=0 // pred_check_branch
    %19 = sbr.rel (0) target = $region13
  $region12: #{double_conv.1} parent=0 // pred_region
    _
  $region13: #{double_conv.1} parent=0 // pred_fallthru
    _
  // Predicated region
  $region14: #{double_conv.1} parent=0 // pred_check
    _
  $region15: #{double_conv.1} parent=0 // pred_check_branch
    %21 = sbr.rel (0) target = $region17
  $region16: #{double_conv.1} parent=0 // pred_region
    _
  $region17: #{double_conv.1} parent=0 // pred_fallthru
    _
  // Predicated region
  $region18: #{double_conv.1} parent=0 // pred_check
    _
  $region19: #{double_conv.1} parent=0 // pred_check_branch
    %23 = sbr.rel (0) target = $region21
  $region20: #{double_conv.1} parent=0 // pred_region
    _
  $region21: #{double_conv.1} parent=0 // pred_fallthru
    _
  // Predicated region
  $region22: #{double_conv.1} parent=0 // pred_check
    _
  $region23: #{double_conv.1} parent=0 // pred_check_branch
    %25 = sbr.rel (0) target = $region25
  $region24: #{double_conv.1} parent=0 // pred_region
    _
  $region25: #{double_conv.1} parent=0 // pred_fallthru
    _
  // Predicated region
  $region26: #{double_conv.1} parent=0 // pred_check
    _
  $region27: #{double_conv.1} parent=0 // pred_check_branch
    %27 = sbr.rel (0) target = $region29
  $region28: #{double_conv.1} parent=0 // pred_region
    _
  $region29: #{double_conv.1} parent=0 // pred_fallthru
    _
  // Predicated region
  $region30: #{double_conv.1} parent=0 // pred_check
    _
  $region31: #{double_conv.1} parent=0 // pred_check_branch
    %29 = sbr.rel (0) target = $region33
  $region32: #{double_conv.1} parent=0 // pred_region
    _
  $region33: #{double_conv.1} parent=0 // pred_fallthru
    _
  // Predicated region
  $region34: #{double_conv.1} parent=0 // pred_check
    _
  $region35: #{double_conv.1} parent=0 // pred_check_branch
    %31 = sbr.rel (0) target = $region37
  $region36: #{double_conv.1} parent=0 // pred_region
    _
  $region37: #{double_conv.1} parent=0 // pred_fallthru
    _
  %vm32 = vcmask 548864
  %33 = vst.msk [vmem:[#allocation2] sm:$0x1] %vm32, 0.0
  %34 = vst.msk [vmem:[#allocation2 + $0x18] sm:$0x1] %vm32, 0.0
  %35 = vst.msk [vmem:[#allocation2 + $0x11] sm:$0x1] %vm32, 0.0
  %36 = vst.msk [vmem:[#allocation2 + $0x29] sm:$0x1] %vm32, 0.0
  %vm37 = vcmask 556544
  %38 = vst.msk [vmem:[#allocation2] sm:$0xff] %vm37, 0.0
  %39 = vst.msk [vmem:[#allocation2 + $0x8] sm:$0xff] %vm37, 0.0
  %vm40 = vcmask 550400
  %41 = vst.msk [vmem:[#allocation2 + $0x10] sm:$0x3] %vm40, 0.0
  %42 = vst.msk [vmem:[#allocation2 + $0x18] sm:$0xff] %vm37, 0.0
  %43 = vst.msk [vmem:[#allocation2 + $0x20] sm:$0xff] %vm37, 0.0
  %44 = vst.msk [vmem:[#allocation2 + $0x28] sm:$0x3] %vm40, 0.0
  %v45 = vld [vmem:[%s0] sm:$0xff]
  %v46 = vld [vmem:[%s0 + $0x8] sm:$0xff]
  %v47 = vld [vmem:[%s0 + $0x10] sm:$0xff]
  %v48 = vld [vmem:[%s0 + $0x18] sm:$0xff]
  %vm49 = vcmask 523264
  %50 = vst.msk [vmem:[#allocation2 + $0x1] sm:$0xff] %vm49, %v45
  %51 = vst.msk [vmem:[#allocation2 + $0x9] sm:$0xff] %vm49, %v46
  %52 = vst.msk [vmem:[#allocation2 + $0x19] sm:$0xff] %vm49, %v47
  %53 = vst.msk [vmem:[#allocation2 + $0x21] sm:$0xff] %vm49, %v48
  %v54 = vld [vmem:[#allocation2] sm:$0xff]
  %v55 = vld [vmem:[#allocation2 + $0x8] sm:$0xff]
  %v56 = vld [vmem:[#allocation2 + $0x18] sm:$0xff]
  %v57 = vld [vmem:[#allocation2 + $0x20] sm:$0xff]
  %v58 = vld [vmem:[%s1] sm:$0xff]
  %v59 = vld [vmem:[%s1 + $0x8] sm:$0xff]
  %v60 = vld [vmem:[%s1 + $0x10] sm:$0xff]
  %v61 = vld [vmem:[%s1 + $0x18] sm:$0xff]
  %v62 = vld [vmem:[%s1 + $0x20] sm:$0xff]
  %v63 = vld [vmem:[%s1 + $0x28] sm:$0xff]
  %v64 = vld [vmem:[%s1 + $0x30] sm:$0xff]
  %v65 = vld [vmem:[%s1 + $0x38] sm:$0xff]
  %v66 = vld [vmem:[%s1 + $0x40] sm:$0xf]
  %v67 = vld [vmem:[#allocation2 + $0x1] sm:$0xff]
  %v68 = vld [vmem:[#allocation2 + $0x9] sm:$0xff]
  %v69 = vld [vmem:[#allocation2 + $0x19] sm:$0xff]
  %v70 = vld [vmem:[#allocation2 + $0x21] sm:$0xff]
  %s71 = scalar_lea.vmem %s1, 72
  %v72 = vld [vmem:[%s71] sm:$0xff]
  %v73 = vld [vmem:[%s71 + $0x8] sm:$0xff]
  %v74 = vld [vmem:[%s71 + $0x10] sm:$0xff]
  %v75 = vld [vmem:[%s71 + $0x18] sm:$0xff]
  %v76 = vld [vmem:[%s71 + $0x20] sm:$0xff]
  %v77 = vld [vmem:[%s71 + $0x28] sm:$0xff]
  %v78 = vld [vmem:[%s71 + $0x30] sm:$0xff]
  %v79 = vld [vmem:[%s71 + $0x38] sm:$0xff]
  %v80 = vld [vmem:[%s71 + $0x40] sm:$0xf]
  %vm81 = vcmask 556032
  %v83 = vsel %vm81, %v67, 0
  %v86 = vsel %vm81, %v68, 0
  %v89 = vsel %vm81, %v69, 0
  %v92 = vsel %vm81, %v70, 0
  %vm94 = vcmask 1043456
  %v96 = vsel %vm94, %v80, 0
  %98 = vmatprep.subr.mxu0 0.0
  %99 = vmatpush1.msra.mxu0 0.0
  %100 = vmatprep.subr.mxu0 0.0
  %101 = vmatpush1.msra.mxu0 0.0
  %102 = vmatprep.subr.mxu0 0.0
  %103 = vmatpush1.msra.mxu0 0.0
  %104 = vmatprep.subr.mxu0 0.0
  %105 = vmatpush1.msra.mxu0 0.0
  %106 = vmatprep.subr.mxu0 0.0
  %107 = vmatpush1.msra.mxu0 0.0
  %108 = vmatprep.subr.mxu0 0.0
  %109 = vmatpush1.msra.mxu0 0.0
  %110 = vmatprep.subr.mxu0 0.0
  %111 = vmatpush1.msra.mxu0 0.0
  %112 = vmatprep.subr.mxu0 0.0
  %113 = vmatpush1.msra.mxu0 %v96
  %114 = vmatprep.subr.mxu0 0.0
  %115 = vmatpush1.msra.mxu0 %v79
  %116 = vmatprep.subr.mxu0 0.0
  %117 = vmatpush1.msra.mxu0 %v78
  %118 = vmatprep.subr.mxu0 0.0
  %119 = vmatpush1.msra.mxu0 %v77
  %120 = vmatprep.subr.mxu0 0.0
  %121 = vmatpush1.msra.mxu0 %v76
  %122 = vmatprep.subr.mxu0 0.0
  %123 = vmatpush1.msra.mxu0 %v75
  %124 = vmatprep.subr.mxu0 0.0
  %125 = vmatpush1.msra.mxu0 %v74
  %126 = vmatprep.subr.mxu0 0.0
  %127 = vmatpush1.msra.mxu0 %v73
  %128 = vmatprep.subr.mxu0 0.0
  %129 = vmatpush1.msra.mxu0 %v72
  %130 = vmatprep.subr.mxu0 0.0
  %131 = vmatpush2.msra.mxu0 0.0
  %132 = vmatprep.subr.mxu0 0.0
  %133 = vmatpush2.msra.mxu0 0.0
  %134 = vmatprep.subr.mxu0 0.0
  %135 = vmatpush2.msra.mxu0 0.0
  %136 = vmatprep.subr.mxu0 0.0
  %137 = vmatpush2.msra.mxu0 0.0
  %138 = vmatprep.subr.mxu0 0.0
  %139 = vmatpush2.msra.mxu0 0.0
  %140 = vmatprep.subr.mxu0 0.0
  %141 = vmatpush2.msra.mxu0 0.0
  %142 = vmatprep.subr.mxu0 0.0
  %143 = vmatpush2.msra.mxu0 0.0
  %144 = vmatprep.subr.mxu0 0.0
  %145 = vmatpush2.msra.mxu0 0.0
  %146 = vmatprep.subr.mxu0 0.0
  %147 = vmatpush2.msra.mxu0 0.0
  %148 = vmatprep.subr.mxu0 0.0
  %149 = vmatpush2.msra.mxu0 0.0
  %150 = vmatprep.subr.mxu0 0.0
  %151 = vmatpush2.msra.mxu0 0.0
  %152 = vmatprep.subr.mxu0 0.0
  %153 = vmatpush2.msra.mxu0 0.0
  %154 = vmatprep.subr.mxu0 0.0
  %155 = vmatpush2.msra.mxu0 0.0
  %156 = vmatprep.subr.mxu0 0.0
  %157 = vmatpush2.msra.mxu0 0.0
  %158 = vmatprep.subr.mxu0 0.0
  %159 = vmatpush2.msra.mxu0 0.0
  %160 = vmatprep.subr.mxu0 0.0
  %161 = vmatpush2.msra.mxu0 0.0
  %162 = vmatprep.mubr.f32.mxu0 0.0
  %163 = vmatmul.mubr.f32.gmra.mxu0 %v83
  %v164 = vpop.f32.mrf.mxu0
  %v165 = vadd.f32 0.0, %v164
  %v166 = vpop.f32.mrf.mxu0
  %167 = vmatprep.mubr.f32.mxu0 0.0
  %168 = vmatmul.mubr.f32.gmra.mxu0 %v86
  %v169 = vpop.f32.mrf.mxu0
  %v170 = vadd.f32 0.0, %v169
  %v171 = vpop.f32.mrf.mxu0
  %172 = vmatprep.mubr.f32.mxu0 0.0
  %173 = vmatmul.mubr.f32.gmra.mxu0 %v89
  %v174 = vpop.f32.mrf.mxu0
  %v175 = vadd.f32 0.0, %v174
  %v176 = vpop.f32.mrf.mxu0
  %177 = vmatprep.mubr.f32.mxu0 0.0
  %178 = vmatmul.mubr.f32.gmra.mxu0 %v92
  %v179 = vpop.f32.mrf.mxu0
  %v180 = vadd.f32 0.0, %v179
  %v181 = vpop.f32.mrf.mxu0
  %182 = vdwg.mxu0
  %v184 = vsel %vm81, %v54, 0
  %v187 = vsel %vm81, %v55, 0
  %v190 = vsel %vm81, %v56, 0
  %v193 = vsel %vm81, %v57, 0
  %v196 = vsel %vm94, %v66, 0
  %198 = vmatprep.subr.mxu0 0.0
  %199 = vmatpush1.msra.mxu0 0.0
  %200 = vmatprep.subr.mxu0 0.0
  %201 = vmatpush1.msra.mxu0 0.0
  %202 = vmatprep.subr.mxu0 0.0
  %203 = vmatpush1.msra.mxu0 0.0
  %204 = vmatprep.subr.mxu0 0.0
  %205 = vmatpush1.msra.mxu0 0.0
  %206 = vmatprep.subr.mxu0 0.0
  %207 = vmatpush1.msra.mxu0 0.0
  %208 = vmatprep.subr.mxu0 0.0
  %209 = vmatpush1.msra.mxu0 0.0
  %210 = vmatprep.subr.mxu0 0.0
  %211 = vmatpush1.msra.mxu0 0.0
  %212 = vmatprep.subr.mxu0 0.0
  %213 = vmatpush1.msra.mxu0 %v196
  %214 = vmatprep.subr.mxu0 0.0
  %215 = vmatpush1.msra.mxu0 %v65
  %216 = vmatprep.subr.mxu0 0.0
  %217 = vmatpush1.msra.mxu0 %v64
  %218 = vmatprep.subr.mxu0 0.0
  %219 = vmatpush1.msra.mxu0 %v63
  %220 = vmatprep.subr.mxu0 0.0
  %221 = vmatpush1.msra.mxu0 %v62
  %222 = vmatprep.subr.mxu0 0.0
  %223 = vmatpush1.msra.mxu0 %v61
  %224 = vmatprep.subr.mxu0 0.0
  %225 = vmatpush1.msra.mxu0 %v60
  %226 = vmatprep.subr.mxu0 0.0
  %227 = vmatpush1.msra.mxu0 %v59
  %228 = vmatprep.subr.mxu0 0.0
  %229 = vmatpush1.msra.mxu0 %v58
  %230 = vmatprep.subr.mxu0 0.0
  %231 = vmatpush2.msra.mxu0 0.0
  %232 = vmatprep.subr.mxu0 0.0
  %233 = vmatpush2.msra.mxu0 0.0
  %234 = vmatprep.subr.mxu0 0.0
  %235 = vmatpush2.msra.mxu0 0.0
  %236 = vmatprep.subr.mxu0 0.0
  %237 = vmatpush2.msra.mxu0 0.0
  %238 = vmatprep.subr.mxu0 0.0
  %239 = vmatpush2.msra.mxu0 0.0
  %240 = vmatprep.subr.mxu0 0.0
  %241 = vmatpush2.msra.mxu0 0.0
  %242 = vmatprep.subr.mxu0 0.0
  %243 = vmatpush2.msra.mxu0 0.0
  %244 = vmatprep.subr.mxu0 0.0
  %245 = vmatpush2.msra.mxu0 0.0
  %246 = vmatprep.subr.mxu0 0.0
  %247 = vmatpush2.msra.mxu0 0.0
  %248 = vmatprep.subr.mxu0 0.0
  %249 = vmatpush2.msra.mxu0 0.0
  %250 = vmatprep.subr.mxu0 0.0
  %251 = vmatpush2.msra.mxu0 0.0
  %252 = vmatprep.subr.mxu0 0.0
  %253 = vmatpush2.msra.mxu0 0.0
  %254 = vmatprep.subr.mxu0 0.0
  %255 = vmatpush2.msra.mxu0 0.0
  %256 = vmatprep.subr.mxu0 0.0
  %257 = vmatpush2.msra.mxu0 0.0
  %258 = vmatprep.subr.mxu0 0.0
  %259 = vmatpush2.msra.mxu0 0.0
  %260 = vmatprep.subr.mxu0 0.0
  %261 = vmatpush2.msra.mxu0 0.0
  %262 = vmatprep.mubr.f32.mxu0 0.0
  %263 = vmatmul.mubr.f32.gmra.mxu0 %v184
  %v264 = vpop.f32.mrf.mxu0
  %v265 = vadd.f32 %v165, %v264
  %v266 = vpop.f32.mrf.mxu0
  %267 = vmatprep.mubr.f32.mxu0 0.0
  %268 = vmatmul.mubr.f32.gmra.mxu0 %v187
  %v269 = vpop.f32.mrf.mxu0
  %v270 = vadd.f32 %v170, %v269
  %v271 = vpop.f32.mrf.mxu0
  %272 = vmatprep.mubr.f32.mxu0 0.0
  %273 = vmatmul.mubr.f32.gmra.mxu0 %v190
  %v274 = vpop.f32.mrf.mxu0
  %v275 = vadd.f32 %v175, %v274
  %v276 = vpop.f32.mrf.mxu0
  %277 = vmatprep.mubr.f32.mxu0 0.0
  %278 = vmatmul.mubr.f32.gmra.mxu0 %v193
  %v279 = vpop.f32.mrf.mxu0
  %v280 = vadd.f32 %v180, %v279
  %v281 = vpop.f32.mrf.mxu0
  %282 = vdwg.mxu0
  %v283 = vld [vmem:[#allocation2 + $0x2] sm:$0xff]
  %v284 = vld [vmem:[#allocation2 + $0xa] sm:$0xff]
  %v285 = vld [vmem:[#allocation2 + $0x1a] sm:$0xff]
  %v286 = vld [vmem:[#allocation2 + $0x22] sm:$0xff]
  %s287 = scalar_lea.vmem %s1, 144
  %v288 = vld [vmem:[%s287] sm:$0xff]
  %v289 = vld [vmem:[%s287 + $0x8] sm:$0xff]
  %v290 = vld [vmem:[%s287 + $0x10] sm:$0xff]
  %v291 = vld [vmem:[%s287 + $0x18] sm:$0xff]
  %v292 = vld [vmem:[%s287 + $0x20] sm:$0xff]
  %v293 = vld [vmem:[%s287 + $0x28] sm:$0xff]
  %v294 = vld [vmem:[%s287 + $0x30] sm:$0xff]
  %v295 = vld [vmem:[%s287 + $0x38] sm:$0xff]
  %v296 = vld [vmem:[%s287 + $0x40] sm:$0xf]
  %v298 = vsel %vm81, %v283, 0
  %v301 = vsel %vm81, %v284, 0
  %v304 = vsel %vm81, %v285, 0
  %v307 = vsel %vm81, %v286, 0
  %v310 = vsel %vm94, %v296, 0
  %312 = vmatprep.subr.mxu0 0.0
  %313 = vmatpush1.msra.mxu0 0.0
  %314 = vmatprep.subr.mxu0 0.0
  %315 = vmatpush1.msra.mxu0 0.0
  %316 = vmatprep.subr.mxu0 0.0
  %317 = vmatpush1.msra.mxu0 0.0
  %318 = vmatprep.subr.mxu0 0.0
  %319 = vmatpush1.msra.mxu0 0.0
  %320 = vmatprep.subr.mxu0 0.0
  %321 = vmatpush1.msra.mxu0 0.0
  %322 = vmatprep.subr.mxu0 0.0
  %323 = vmatpush1.msra.mxu0 0.0
  %324 = vmatprep.subr.mxu0 0.0
  %325 = vmatpush1.msra.mxu0 0.0
  %326 = vmatprep.subr.mxu0 0.0
  %327 = vmatpush1.msra.mxu0 %v310
  %328 = vmatprep.subr.mxu0 0.0
  %329 = vmatpush1.msra.mxu0 %v295
  %330 = vmatprep.subr.mxu0 0.0
  %331 = vmatpush1.msra.mxu0 %v294
  %332 = vmatprep.subr.mxu0 0.0
  %333 = vmatpush1.msra.mxu0 %v293
  %334 = vmatprep.subr.mxu0 0.0
  %335 = vmatpush1.msra.mxu0 %v292
  %336 = vmatprep.subr.mxu0 0.0
  %337 = vmatpush1.msra.mxu0 %v291
  %338 = vmatprep.subr.mxu0 0.0
  %339 = vmatpush1.msra.mxu0 %v290
  %340 = vmatprep.subr.mxu0 0.0
  %341 = vmatpush1.msra.mxu0 %v289
  %342 = vmatprep.subr.mxu0 0.0
  %343 = vmatpush1.msra.mxu0 %v288
  %344 = vmatprep.subr.mxu0 0.0
  %345 = vmatpush2.msra.mxu0 0.0
  %346 = vmatprep.subr.mxu0 0.0
  %347 = vmatpush2.msra.mxu0 0.0
  %348 = vmatprep.subr.mxu0 0.0
  %349 = vmatpush2.msra.mxu0 0.0
  %350 = vmatprep.subr.mxu0 0.0
  %351 = vmatpush2.msra.mxu0 0.0
  %352 = vmatprep.subr.mxu0 0.0
  %353 = vmatpush2.msra.mxu0 0.0
  %354 = vmatprep.subr.mxu0 0.0
  %355 = vmatpush2.msra.mxu0 0.0
  %356 = vmatprep.subr.mxu0 0.0
  %357 = vmatpush2.msra.mxu0 0.0
  %358 = vmatprep.subr.mxu0 0.0
  %359 = vmatpush2.msra.mxu0 0.0
  %360 = vmatprep.subr.mxu0 0.0
  %361 = vmatpush2.msra.mxu0 0.0
  %362 = vmatprep.subr.mxu0 0.0
  %363 = vmatpush2.msra.mxu0 0.0
  %364 = vmatprep.subr.mxu0 0.0
  %365 = vmatpush2.msra.mxu0 0.0
  %366 = vmatprep.subr.mxu0 0.0
  %367 = vmatpush2.msra.mxu0 0.0
  %368 = vmatprep.subr.mxu0 0.0
  %369 = vmatpush2.msra.mxu0 0.0
  %370 = vmatprep.subr.mxu0 0.0
  %371 = vmatpush2.msra.mxu0 0.0
  %372 = vmatprep.subr.mxu0 0.0
  %373 = vmatpush2.msra.mxu0 0.0
  %374 = vmatprep.subr.mxu0 0.0
  %375 = vmatpush2.msra.mxu0 0.0
  %376 = vmatprep.mubr.f32.mxu0 0.0
  %377 = vmatmul.mubr.f32.gmra.mxu0 %v298
  %v378 = vpop.f32.mrf.mxu0
  %v379 = vadd.f32 0.0, %v378
  %v380 = vpop.f32.mrf.mxu0
  %381 = vmatprep.mubr.f32.mxu0 0.0
  %382 = vmatmul.mubr.f32.gmra.mxu0 %v301
  %v383 = vpop.f32.mrf.mxu0
  %v384 = vadd.f32 0.0, %v383
  %v385 = vpop.f32.mrf.mxu0
  %386 = vmatprep.mubr.f32.mxu0 0.0
  %387 = vmatmul.mubr.f32.gmra.mxu0 %v304
  %v388 = vpop.f32.mrf.mxu0
  %v389 = vadd.f32 0.0, %v388
  %v390 = vpop.f32.mrf.mxu0
  %391 = vmatprep.mubr.f32.mxu0 0.0
  %392 = vmatmul.mubr.f32.gmra.mxu0 %v307
  %v393 = vpop.f32.mrf.mxu0
  %v394 = vadd.f32 0.0, %v393
  %v395 = vpop.f32.mrf.mxu0
  %396 = vdwg.mxu0
  %v397 = vadd.f32 %v265, %v379
  %v398 = vadd.f32 %v270, %v384
  %v399 = vadd.f32 %v275, %v389
  %v400 = vadd.f32 %v280, %v394
  %v401 = vld [vmem:[%s2] sm:$0xff]
  %v402 = vld [vmem:[%s2 + $0x8] sm:$0xff]
  %v403 = vld [vmem:[%s2 + $0x10] sm:$0xff]
  %v404 = vld [vmem:[%s2 + $0x18] sm:$0xff]
  %v405 = vld [vmem:[%s2 + $0x20] sm:$0xff]
  %v406 = vld [vmem:[%s2 + $0x28] sm:$0xff]
  %v407 = vld [vmem:[%s2 + $0x30] sm:$0xff]
  %v408 = vld [vmem:[%s2 + $0x38] sm:$0xff]
  %v409 = vld [vmem:[%s2 + $0x40] sm:$0xff]
  %v410 = vld [vmem:[%s2 + $0x48] sm:$0xff]
  %v411 = vld [vmem:[%s2 + $0x50] sm:$0xff]
  %v412 = vld [vmem:[%s2 + $0x58] sm:$0xff]
  %v413 = vld [vmem:[%s2 + $0x60] sm:$0xff]
  %v414 = vld [vmem:[%s2 + $0x68] sm:$0xff]
  %v415 = vld [vmem:[%s2 + $0x70] sm:$0xff]
  %v416 = vld [vmem:[%s2 + $0x78] sm:$0xff]
  %v417 = vld [vmem:[%s3] sm:$0x1]
  %v418 = vld [vmem:[%s4] sm:$0x1]
  %419 = vmatprep.subr.mxu0 0.0
  %420 = vmatpush1.msra.mxu0 %v416
  %421 = vmatprep.subr.mxu0 0.0
  %422 = vmatpush1.msra.mxu0 %v415
  %423 = vmatprep.subr.mxu0 0.0
  %424 = vmatpush1.msra.mxu0 %v414
  %425 = vmatprep.subr.mxu0 0.0
  %426 = vmatpush1.msra.mxu0 %v413
  %427 = vmatprep.subr.mxu0 0.0
  %428 = vmatpush1.msra.mxu0 %v412
  %429 = vmatprep.subr.mxu0 0.0
  %430 = vmatpush1.msra.mxu0 %v411
  %431 = vmatprep.subr.mxu0 0.0
  %432 = vmatpush1.msra.mxu0 %v410
  %433 = vmatprep.subr.mxu0 0.0
  %434 = vmatpush1.msra.mxu0 %v409
  %435 = vmatprep.subr.mxu0 0.0
  %436 = vmatpush1.msra.mxu0 %v408
  %437 = vmatprep.subr.mxu0 0.0
  %438 = vmatpush1.msra.mxu0 %v407
  %439 = vmatprep.subr.mxu0 0.0
  %440 = vmatpush1.msra.mxu0 %v406
  %441 = vmatprep.subr.mxu0 0.0
  %442 = vmatpush1.msra.mxu0 %v405
  %443 = vmatprep.subr.mxu0 0.0
  %444 = vmatpush1.msra.mxu0 %v404
  %445 = vmatprep.subr.mxu0 0.0
  %446 = vmatpush1.msra.mxu0 %v403
  %447 = vmatprep.subr.mxu0 0.0
  %448 = vmatpush1.msra.mxu0 %v402
  %449 = vmatprep.subr.mxu0 0.0
  %450 = vmatpush1.msra.mxu0 %v401
  %451 = vmatprep.subr.mxu0 0.0
  %452 = vmatpush2.msra.mxu0 0.0
  %453 = vmatprep.subr.mxu0 0.0
  %454 = vmatpush2.msra.mxu0 0.0
  %455 = vmatprep.subr.mxu0 0.0
  %456 = vmatpush2.msra.mxu0 0.0
  %457 = vmatprep.subr.mxu0 0.0
  %458 = vmatpush2.msra.mxu0 0.0
  %459 = vmatprep.subr.mxu0 0.0
  %460 = vmatpush2.msra.mxu0 0.0
  %461 = vmatprep.subr.mxu0 0.0
  %462 = vmatpush2.msra.mxu0 0.0
  %463 = vmatprep.subr.mxu0 0.0
  %464 = vmatpush2.msra.mxu0 0.0
  %465 = vmatprep.subr.mxu0 0.0
  %466 = vmatpush2.msra.mxu0 0.0
  %467 = vmatprep.subr.mxu0 0.0
  %468 = vmatpush2.msra.mxu0 0.0
  %469 = vmatprep.subr.mxu0 0.0
  %470 = vmatpush2.msra.mxu0 0.0
  %471 = vmatprep.subr.mxu0 0.0
  %472 = vmatpush2.msra.mxu0 0.0
  %473 = vmatprep.subr.mxu0 0.0
  %474 = vmatpush2.msra.mxu0 0.0
  %475 = vmatprep.subr.mxu0 0.0
  %476 = vmatpush2.msra.mxu0 0.0
  %477 = vmatprep.subr.mxu0 0.0
  %478 = vmatpush2.msra.mxu0 0.0
  %479 = vmatprep.subr.mxu0 0.0
  %480 = vmatpush2.msra.mxu0 0.0
  %481 = vmatprep.subr.mxu0 0.0
  %482 = vmatpush2.msra.mxu0 0.0
  %483 = vmatprep.mubr.f32.mxu0 0.0
  %484 = vmatmul.mubr.f32.gmra.mxu0 %v397
  %v485 = vpop.f32.mrf.mxu0
  %v486 = vadd.f32 0.0, %v485
  %v487 = vpop.f32.mrf.mxu0
  %488 = vmatprep.mubr.f32.mxu0 0.0
  %489 = vmatmul.mubr.f32.gmra.mxu0 %v398
  %v490 = vpop.f32.mrf.mxu0
  %v491 = vadd.f32 0.0, %v490
  %v492 = vpop.f32.mrf.mxu0
  %493 = vmatprep.mubr.f32.mxu0 0.0
  %494 = vmatmul.mubr.f32.gmra.mxu0 %v399
  %v495 = vpop.f32.mrf.mxu0
  %v496 = vadd.f32 0.0, %v495
  %v497 = vpop.f32.mrf.mxu0
  %498 = vmatprep.mubr.f32.mxu0 0.0
  %499 = vmatmul.mubr.f32.gmra.mxu0 %v400
  %v500 = vpop.f32.mrf.mxu0
  %v501 = vadd.f32 0.0, %v500
  %v502 = vpop.f32.mrf.mxu0
  %503 = vdwg.mxu0
  %v504 = vadd.f32 %v486, %v491
  %v505 = vadd.f32 %v504, %v496
  %v506 = vadd.f32 %v505, %v501
  %v507 = vrot.slane %v506, 4
  %v508 = vadd.f32 %v506, %v507
  %v509 = vrot.slane %v508, 2
  %v510 = vadd.f32 %v508, %v509
  %v511 = vrot.slane %v510, 1
  %v512 = vadd.f32 %v510, %v511
  %v513 = vmul.f32 %v512, 0.001953125
  %v514 = vmul.f32 %v397, %v397
  %v515 = vmul.f32 %v398, %v398
  %v516 = vmul.f32 %v399, %v399
  %v517 = vmul.f32 %v400, %v400
  %518 = vmatprep.subr.mxu0 0.0
  %519 = vmatpush1.msra.mxu0 %v416
  %520 = vmatprep.subr.mxu0 0.0
  %521 = vmatpush1.msra.mxu0 %v415
  %522 = vmatprep.subr.mxu0 0.0
  %523 = vmatpush1.msra.mxu0 %v414
  %524 = vmatprep.subr.mxu0 0.0
  %525 = vmatpush1.msra.mxu0 %v413
  %526 = vmatprep.subr.mxu0 0.0
  %527 = vmatpush1.msra.mxu0 %v412
  %528 = vmatprep.subr.mxu0 0.0
  %529 = vmatpush1.msra.mxu0 %v411
  %530 = vmatprep.subr.mxu0 0.0
  %531 = vmatpush1.msra.mxu0 %v410
  %532 = vmatprep.subr.mxu0 0.0
  %533 = vmatpush1.msra.mxu0 %v409
  %534 = vmatprep.subr.mxu0 0.0
  %535 = vmatpush1.msra.mxu0 %v408
  %536 = vmatprep.subr.mxu0 0.0
  %537 = vmatpush1.msra.mxu0 %v407
  %538 = vmatprep.subr.mxu0 0.0
  %539 = vmatpush1.msra.mxu0 %v406
  %540 = vmatprep.subr.mxu0 0.0
  %541 = vmatpush1.msra.mxu0 %v405
  %542 = vmatprep.subr.mxu0 0.0
  %543 = vmatpush1.msra.mxu0 %v404
  %544 = vmatprep.subr.mxu0 0.0
  %545 = vmatpush1.msra.mxu0 %v403
  %546 = vmatprep.subr.mxu0 0.0
  %547 = vmatpush1.msra.mxu0 %v402
  %548 = vmatprep.subr.mxu0 0.0
  %549 = vmatpush1.msra.mxu0 %v401
  %550 = vmatprep.subr.mxu0 0.0
  %551 = vmatpush2.msra.mxu0 0.0
  %552 = vmatprep.subr.mxu0 0.0
  %553 = vmatpush2.msra.mxu0 0.0
  %554 = vmatprep.subr.mxu0 0.0
  %555 = vmatpush2.msra.mxu0 0.0
  %556 = vmatprep.subr.mxu0 0.0
  %557 = vmatpush2.msra.mxu0 0.0
  %558 = vmatprep.subr.mxu0 0.0
  %559 = vmatpush2.msra.mxu0 0.0
  %560 = vmatprep.subr.mxu0 0.0
  %561 = vmatpush2.msra.mxu0 0.0
  %562 = vmatprep.subr.mxu0 0.0
  %563 = vmatpush2.msra.mxu0 0.0
  %564 = vmatprep.subr.mxu0 0.0
  %565 = vmatpush2.msra.mxu0 0.0
  %566 = vmatprep.subr.mxu0 0.0
  %567 = vmatpush2.msra.mxu0 0.0
  %568 = vmatprep.subr.mxu0 0.0
  %569 = vmatpush2.msra.mxu0 0.0
  %570 = vmatprep.subr.mxu0 0.0
  %571 = vmatpush2.msra.mxu0 0.0
  %572 = vmatprep.subr.mxu0 0.0
  %573 = vmatpush2.msra.mxu0 0.0
  %574 = vmatprep.subr.mxu0 0.0
  %575 = vmatpush2.msra.mxu0 0.0
  %576 = vmatprep.subr.mxu0 0.0
  %577 = vmatpush2.msra.mxu0 0.0
  %578 = vmatprep.subr.mxu0 0.0
  %579 = vmatpush2.msra.mxu0 0.0
  %580 = vmatprep.subr.mxu0 0.0
  %581 = vmatpush2.msra.mxu0 0.0
  %582 = vmatprep.mubr.f32.mxu0 0.0
  %583 = vmatmul.mubr.f32.gmra.mxu0 %v514
  %v584 = vpop.f32.mrf.mxu0
  %v585 = vadd.f32 0.0, %v584
  %v586 = vpop.f32.mrf.mxu0
  %587 = vmatprep.mubr.f32.mxu0 0.0
  %588 = vmatmul.mubr.f32.gmra.mxu0 %v515
  %v589 = vpop.f32.mrf.mxu0
  %v590 = vadd.f32 0.0, %v589
  %v591 = vpop.f32.mrf.mxu0
  %592 = vmatprep.mubr.f32.mxu0 0.0
  %593 = vmatmul.mubr.f32.gmra.mxu0 %v516
  %v594 = vpop.f32.mrf.mxu0
  %v595 = vadd.f32 0.0, %v594
  %v596 = vpop.f32.mrf.mxu0
  %597 = vmatprep.mubr.f32.mxu0 0.0
  %598 = vmatmul.mubr.f32.gmra.mxu0 %v517
  %v599 = vpop.f32.mrf.mxu0
  %v600 = vadd.f32 0.0, %v599
  %v601 = vpop.f32.mrf.mxu0
  %602 = vdwg.mxu0
  %v603 = vadd.f32 %v585, %v590
  %v604 = vadd.f32 %v603, %v595
  %v605 = vadd.f32 %v604, %v600
  %v606 = vrot.slane %v605, 4
  %v607 = vadd.f32 %v605, %v606
  %v608 = vrot.slane %v607, 2
  %v609 = vadd.f32 %v607, %v608
  %v610 = vrot.slane %v609, 1
  %v611 = vadd.f32 %v609, %v610
  %v612 = vmul.f32 %v611, 0.001953125
  %v613 = vmul.f32 %v513, %v513
  %v614 = vsub.f32 %v612, %v613
  %v615 = vadd.f32 %v614, 1e-05
  %v616 = vrsqrt.pop %v615
  %v617 = vmul.f32 %v417, %v616
  %v618 = vmul.f32 %v513, %v617
  %v619 = vsub.f32 %v418, %v618
  %v621 = vlaneseq
  %v622 = vshrl.u32 %v621, 7
  %v623 = vsub.s32 0, %v622
  %v624 = vrot.slane %v617, %v623
  %v626 = vmul.f32 %v397, %v624
  %v627 = vmul.f32 %v398, %v624
  %v628 = vmul.f32 %v399, %v624
  %v629 = vmul.f32 %v400, %v624
  %v631 = vlaneseq
  %v632 = vshrl.u32 %v631, 7
  %v633 = vsub.s32 0, %v632
  %v634 = vrot.slane %v619, %v633
  %v636 = vadd.f32 %v626, %v634
  %v637 = vadd.f32 %v627, %v634
  %v638 = vadd.f32 %v628, %v634
  %v639 = vadd.f32 %v629, %v634
  %v640 = vmax.f32 %v636, 0.0
  %v641 = vmax.f32 %v637, 0.0
  %v642 = vmax.f32 %v638, 0.0
  %v643 = vmax.f32 %v639, 0.0
  %v644 = vlaneseq
  %vm645 = vcmp.ge.s32.totalorder %v644, 0
  %vm646 = vcmp.lt.s32.totalorder %v644, 136
  %vm647 = vmand %vm645, %vm646
  %648 = vst.msk [vmem:[#allocation3] ss:$8 sm:$0x3] %vm647, 0.0
  %649 = vst.msk [vmem:[#allocation3] ss:$8 sm:$0x0] %vm647, 0.0
  %s650 = scalar_lea.vmem [#allocation3], 48
  %651 = vst.msk [vmem:[%s650] ss:$8 sm:$0x3] %vm647, 0.0
  %652 = vst.msk [vmem:[%s650] ss:$8 sm:$0x0] %vm647, 0.0
  %s653 = scalar_lea.vmem [#allocation3], 33
  %654 = vst.msk [vmem:[%s653] ss:$8 sm:$0x3] %vm647, 0.0
  %655 = vst.msk [vmem:[%s653] ss:$8 sm:$0x0] %vm647, 0.0
  %s656 = scalar_lea.vmem [#allocation3], 81
  %657 = vst.msk [vmem:[%s656] ss:$8 sm:$0x3] %vm647, 0.0
  %658 = vst.msk [vmem:[%s656] ss:$8 sm:$0x0] %vm647, 0.0
  %vm659 = vcmask 64512
  %660 = vst.msk [vmem:[#allocation3 + $0x8] sm:$0xff] %vm659, 0.0
  %661 = vst.msk [vmem:[#allocation3 + $0x18] sm:$0xff] %vm659, 0.0
  %vm662 = vcmask 58368
  %663 = vst.msk [vmem:[#allocation3 + $0x28] sm:$0x3] %vm662, 0.0
  %664 = vst.msk [vmem:[#allocation3 + $0x38] sm:$0xff] %vm659, 0.0
  %665 = vst.msk [vmem:[#allocation3 + $0x48] sm:$0xff] %vm659, 0.0
  %666 = vst.msk [vmem:[#allocation3 + $0x58] sm:$0x3] %vm662, 0.0
  %vm671 = vcmask 1040384
  %v672 = vrot.slane %v640, 7
  %v673 = vrot.slane %v641, 7
  %v674 = vsel %vm671, %v672, %v673
  %v675 = vrot.slane %v642, 7
  %v676 = vrot.slane %v643, 7
  %v677 = vsel %vm671, %v675, %v676
  %684 = vst [vmem:[#allocation3] sm:$0xfe] %v672
  %685 = vst [vmem:[#allocation3 + $0x10] sm:$0xff] %v674
  %686 = vst [vmem:[#allocation3 + $0x20] sm:$0x1] %v673
  %687 = vst [vmem:[#allocation3 + $0x30] sm:$0xfe] %v675
  %688 = vst [vmem:[#allocation3 + $0x40] sm:$0xff] %v677
  %689 = vst [vmem:[#allocation3 + $0x50] sm:$0x1] %v676
  %v690 = vld [vmem:[#allocation3] sm:$0xff]
  %v691 = vld [vmem:[#allocation3 + $0x8] sm:$0xff]
  %v692 = vld [vmem:[#allocation3 + $0x10] sm:$0xff]
  %v693 = vld [vmem:[#allocation3 + $0x18] sm:$0xff]
  %v694 = vld [vmem:[#allocation3 + $0x30] sm:$0xff]
  %v695 = vld [vmem:[#allocation3 + $0x38] sm:$0xff]
  %v696 = vld [vmem:[#allocation3 + $0x40] sm:$0xff]
  %v697 = vld [vmem:[#allocation3 + $0x48] sm:$0xff]
  %v698 = vld [vmem:[%s5] sm:$0xff]
  %v699 = vld [vmem:[%s5 + $0x8] sm:$0xff]
  %v700 = vld [vmem:[%s5 + $0x10] sm:$0xff]
  %v701 = vld [vmem:[%s5 + $0x18] sm:$0xff]
  %v702 = vld [vmem:[%s5 + $0x20] sm:$0xff]
  %v703 = vld [vmem:[%s5 + $0x28] sm:$0xff]
  %v704 = vld [vmem:[%s5 + $0x30] sm:$0xff]
  %v705 = vld [vmem:[%s5 + $0x38] sm:$0xff]
  %v706 = vld [vmem:[%s5 + $0x40] sm:$0xff]
  %v707 = vld [vmem:[%s5 + $0x48] sm:$0xff]
  %v708 = vld [vmem:[%s5 + $0x50] sm:$0xff]
  %v709 = vld [vmem:[%s5 + $0x58] sm:$0xff]
  %v710 = vld [vmem:[%s5 + $0x60] sm:$0xff]
  %v711 = vld [vmem:[%s5 + $0x68] sm:$0xff]
  %v712 = vld [vmem:[%s5 + $0x70] sm:$0xff]
  %v713 = vld [vmem:[%s5 + $0x78] sm:$0xff]
  %v714 = vld [vmem:[%s5 + $0x80] sm:$0xff]
  %v715 = vld [vmem:[#allocation3] sm:$0xfe]
  %v716 = vld [vmem:[#allocation3 + $0x8] sm:$0xfe]
  %v717 = vld [vmem:[#allocation3 + $0x20] sm:$0x1]
  %v718 = vld [vmem:[#allocation3 + $0x28] sm:$0x1]
  %v719 = vld [vmem:[#allocation3 + $0x30] sm:$0xfe]
  %v720 = vld [vmem:[#allocation3 + $0x38] sm:$0xfe]
  %v721 = vld [vmem:[#allocation3 + $0x50] sm:$0x1]
  %v722 = vld [vmem:[#allocation3 + $0x58] sm:$0x1]
  %vm735 = vcmask 1046528
  %v736 = vrot.slane %v715, 1
  %v737 = vrot.slane %v692, 1
  %v738 = vsel %vm735, %v736, %v737
  %v739 = vrot.slane %v716, 1
  %v740 = vrot.slane %v693, 1
  %v741 = vsel %vm735, %v739, %v740
  %v742 = vrot.slane %v717, 1
  %v743 = vsel %vm735, %v737, %v742
  %v744 = vrot.slane %v718, 1
  %v745 = vsel %vm735, %v740, %v744
  %v746 = vrot.slane %v719, 1
  %v747 = vrot.slane %v696, 1
  %v748 = vsel %vm735, %v746, %v747
  %v749 = vrot.slane %v720, 1
  %v750 = vrot.slane %v697, 1
  %v751 = vsel %vm735, %v749, %v750
  %v752 = vrot.slane %v721, 1
  %v753 = vsel %vm735, %v747, %v752
  %v754 = vrot.slane %v722, 1
  %v755 = vsel %vm735, %v750, %v754
  %s760 = scalar_lea.vmem %s5, 136
  %v761 = vld [vmem:[%s760] sm:$0xff]
  %v762 = vld [vmem:[%s760 + $0x8] sm:$0xff]
  %v763 = vld [vmem:[%s760 + $0x10] sm:$0xff]
  %v764 = vld [vmem:[%s760 + $0x18] sm:$0xff]
  %v765 = vld [vmem:[%s760 + $0x20] sm:$0xff]
  %v766 = vld [vmem:[%s760 + $0x28] sm:$0xff]
  %v767 = vld [vmem:[%s760 + $0x30] sm:$0xff]
  %v768 = vld [vmem:[%s760 + $0x38] sm:$0xff]
  %v769 = vld [vmem:[%s760 + $0x40] sm:$0xff]
  %v770 = vld [vmem:[%s760 + $0x48] sm:$0xff]
  %v771 = vld [vmem:[%s760 + $0x50] sm:$0xff]
  %v772 = vld [vmem:[%s760 + $0x58] sm:$0xff]
  %v773 = vld [vmem:[%s760 + $0x60] sm:$0xff]
  %v774 = vld [vmem:[%s760 + $0x68] sm:$0xff]
  %v775 = vld [vmem:[%s760 + $0x70] sm:$0xff]
  %v776 = vld [vmem:[%s760 + $0x78] sm:$0xff]
  %v777 = vld [vmem:[%s760 + $0x80] sm:$0xff]
  %v778 = vsel %vm659, %v741, 0
  %v780 = vsel %vm659, %v745, 0
  %v782 = vsel %vm659, %v751, 0
  %v784 = vsel %vm659, %v755, 0
  %786 = vmatprep.subr.mxu0 0.0
  %787 = vmatpush1.msra.mxu0 %v776
  %788 = vmatprep.subr.mxu0 0.0
  %789 = vmatpush1.msra.mxu0 %v775
  %790 = vmatprep.subr.mxu0 0.0
  %791 = vmatpush1.msra.mxu0 %v774
  %792 = vmatprep.subr.mxu0 0.0
  %793 = vmatpush1.msra.mxu0 %v773
  %794 = vmatprep.subr.mxu0 0.0
  %795 = vmatpush1.msra.mxu0 %v772
  %796 = vmatprep.subr.mxu0 0.0
  %797 = vmatpush1.msra.mxu0 %v771
  %798 = vmatprep.subr.mxu0 0.0
  %799 = vmatpush1.msra.mxu0 %v770
  %800 = vmatprep.subr.mxu0 0.0
  %801 = vmatpush1.msra.mxu0 %v769
  %802 = vmatprep.subr.mxu0 0.0
  %803 = vmatpush1.msra.mxu0 %v768
  %804 = vmatprep.subr.mxu0 0.0
  %805 = vmatpush1.msra.mxu0 %v767
  %806 = vmatprep.subr.mxu0 0.0
  %807 = vmatpush1.msra.mxu0 %v766
  %808 = vmatprep.subr.mxu0 0.0
  %809 = vmatpush1.msra.mxu0 %v765
  %810 = vmatprep.subr.mxu0 0.0
  %811 = vmatpush1.msra.mxu0 %v764
  %812 = vmatprep.subr.mxu0 0.0
  %813 = vmatpush1.msra.mxu0 %v763
  %814 = vmatprep.subr.mxu0 0.0
  %815 = vmatpush1.msra.mxu0 %v762
  %816 = vmatprep.subr.mxu0 0.0
  %817 = vmatpush1.msra.mxu0 %v761
  %818 = vmatprep.subr.mxu0 0.0
  %819 = vmatpush2.msra.mxu0 0.0
  %820 = vmatprep.subr.mxu0 0.0
  %821 = vmatpush2.msra.mxu0 0.0
  %822 = vmatprep.subr.mxu0 0.0
  %823 = vmatpush2.msra.mxu0 0.0
  %824 = vmatprep.subr.mxu0 0.0
  %825 = vmatpush2.msra.mxu0 0.0
  %826 = vmatprep.subr.mxu0 0.0
  %827 = vmatpush2.msra.mxu0 0.0
  %828 = vmatprep.subr.mxu0 0.0
  %829 = vmatpush2.msra.mxu0 0.0
  %830 = vmatprep.subr.mxu0 0.0
  %831 = vmatpush2.msra.mxu0 0.0
  %832 = vmatprep.subr.mxu0 0.0
  %833 = vmatpush2.msra.mxu0 0.0
  %834 = vmatprep.subr.mxu0 0.0
  %835 = vmatpush2.msra.mxu0 0.0
  %836 = vmatprep.subr.mxu0 0.0
  %837 = vmatpush2.msra.mxu0 0.0
  %838 = vmatprep.subr.mxu0 0.0
  %839 = vmatpush2.msra.mxu0 0.0
  %840 = vmatprep.subr.mxu0 0.0
  %841 = vmatpush2.msra.mxu0 0.0
  %842 = vmatprep.subr.mxu0 0.0
  %843 = vmatpush2.msra.mxu0 0.0
  %844 = vmatprep.subr.mxu0 0.0
  %845 = vmatpush2.msra.mxu0 0.0
  %846 = vmatprep.subr.mxu0 0.0
  %847 = vmatpush2.msra.mxu0 0.0
  %848 = vmatprep.subr.mxu0 0.0
  %849 = vmatpush2.msra.mxu0 %v777
  %850 = vmatprep.mubr.f32.mxu0 %v778
  %851 = vmatmul.mubr.f32.gmra.mxu0 %v738
  %v852 = vpop.f32.mrf.mxu0
  %v853 = vadd.f32 0.0, %v852
  %v854 = vpop.f32.mrf.mxu0
  %855 = vmatprep.mubr.f32.mxu0 %v780
  %856 = vmatmul.mubr.f32.gmra.mxu0 %v743
  %v857 = vpop.f32.mrf.mxu0
  %v858 = vadd.f32 0.0, %v857
  %v859 = vpop.f32.mrf.mxu0
  %860 = vmatprep.mubr.f32.mxu0 %v782
  %861 = vmatmul.mubr.f32.gmra.mxu0 %v748
  %v862 = vpop.f32.mrf.mxu0
  %v863 = vadd.f32 0.0, %v862
  %v864 = vpop.f32.mrf.mxu0
  %865 = vmatprep.mubr.f32.mxu0 %v784
  %866 = vmatmul.mubr.f32.gmra.mxu0 %v753
  %v867 = vpop.f32.mrf.mxu0
  %v868 = vadd.f32 0.0, %v867
  %v869 = vpop.f32.mrf.mxu0
  %870 = vdwg.mxu0
  %v872 = vsel %vm659, %v691, 0
  %v874 = vsel %vm659, %v693, 0
  %v877 = vsel %vm659, %v695, 0
  %v879 = vsel %vm659, %v697, 0
  %881 = vmatprep.subr.mxu0 0.0
  %882 = vmatpush1.msra.mxu0 %v713
  %883 = vmatprep.subr.mxu0 0.0
  %884 = vmatpush1.msra.mxu0 %v712
  %885 = vmatprep.subr.mxu0 0.0
  %886 = vmatpush1.msra.mxu0 %v711
  %887 = vmatprep.subr.mxu0 0.0
  %888 = vmatpush1.msra.mxu0 %v710
  %889 = vmatprep.subr.mxu0 0.0
  %890 = vmatpush1.msra.mxu0 %v709
  %891 = vmatprep.subr.mxu0 0.0
  %892 = vmatpush1.msra.mxu0 %v708
  %893 = vmatprep.subr.mxu0 0.0
  %894 = vmatpush1.msra.mxu0 %v707
  %895 = vmatprep.subr.mxu0 0.0
  %896 = vmatpush1.msra.mxu0 %v706
  %897 = vmatprep.subr.mxu0 0.0
  %898 = vmatpush1.msra.mxu0 %v705
  %899 = vmatprep.subr.mxu0 0.0
  %900 = vmatpush1.msra.mxu0 %v704
  %901 = vmatprep.subr.mxu0 0.0
  %902 = vmatpush1.msra.mxu0 %v703
  %903 = vmatprep.subr.mxu0 0.0
  %904 = vmatpush1.msra.mxu0 %v702
  %905 = vmatprep.subr.mxu0 0.0
  %906 = vmatpush1.msra.mxu0 %v701
  %907 = vmatprep.subr.mxu0 0.0
  %908 = vmatpush1.msra.mxu0 %v700
  %909 = vmatprep.subr.mxu0 0.0
  %910 = vmatpush1.msra.mxu0 %v699
  %911 = vmatprep.subr.mxu0 0.0
  %912 = vmatpush1.msra.mxu0 %v698
  %913 = vmatprep.subr.mxu0 0.0
  %914 = vmatpush2.msra.mxu0 0.0
  %915 = vmatprep.subr.mxu0 0.0
  %916 = vmatpush2.msra.mxu0 0.0
  %917 = vmatprep.subr.mxu0 0.0
  %918 = vmatpush2.msra.mxu0 0.0
  %919 = vmatprep.subr.mxu0 0.0
  %920 = vmatpush2.msra.mxu0 0.0
  %921 = vmatprep.subr.mxu0 0.0
  %922 = vmatpush2.msra.mxu0 0.0
  %923 = vmatprep.subr.mxu0 0.0
  %924 = vmatpush2.msra.mxu0 0.0
  %925 = vmatprep.subr.mxu0 0.0
  %926 = vmatpush2.msra.mxu0 0.0
  %927 = vmatprep.subr.mxu0 0.0
  %928 = vmatpush2.msra.mxu0 0.0
  %929 = vmatprep.subr.mxu0 0.0
  %930 = vmatpush2.msra.mxu0 0.0
  %931 = vmatprep.subr.mxu0 0.0
  %932 = vmatpush2.msra.mxu0 0.0
  %933 = vmatprep.subr.mxu0 0.0
  %934 = vmatpush2.msra.mxu0 0.0
  %935 = vmatprep.subr.mxu0 0.0
  %936 = vmatpush2.msra.mxu0 0.0
  %937 = vmatprep.subr.mxu0 0.0
  %938 = vmatpush2.msra.mxu0 0.0
  %939 = vmatprep.subr.mxu0 0.0
  %940 = vmatpush2.msra.mxu0 0.0
  %941 = vmatprep.subr.mxu0 0.0
  %942 = vmatpush2.msra.mxu0 0.0
  %943 = vmatprep.subr.mxu0 0.0
  %944 = vmatpush2.msra.mxu0 %v714
  %945 = vmatprep.mubr.f32.mxu0 %v872
  %946 = vmatmul.mubr.f32.gmra.mxu0 %v690
  %v947 = vpop.f32.mrf.mxu0
  %v948 = vadd.f32 %v853, %v947
  %v949 = vpop.f32.mrf.mxu0
  %950 = vmatprep.mubr.f32.mxu0 %v874
  %951 = vmatmul.mubr.f32.gmra.mxu0 %v692
  %v952 = vpop.f32.mrf.mxu0
  %v953 = vadd.f32 %v858, %v952
  %v954 = vpop.f32.mrf.mxu0
  %955 = vmatprep.mubr.f32.mxu0 %v877
  %956 = vmatmul.mubr.f32.gmra.mxu0 %v694
  %v957 = vpop.f32.mrf.mxu0
  %v958 = vadd.f32 %v863, %v957
  %v959 = vpop.f32.mrf.mxu0
  %960 = vmatprep.mubr.f32.mxu0 %v879
  %961 = vmatmul.mubr.f32.gmra.mxu0 %v696
  %v962 = vpop.f32.mrf.mxu0
  %v963 = vadd.f32 %v868, %v962
  %v964 = vpop.f32.mrf.mxu0
  %965 = vdwg.mxu0
  %v966 = vld [vmem:[#allocation3] sm:$0xfc]
  %v967 = vld [vmem:[#allocation3 + $0x8] sm:$0xfc]
  %v968 = vld [vmem:[#allocation3 + $0x20] sm:$0x3]
  %v969 = vld [vmem:[#allocation3 + $0x28] sm:$0x3]
  %v970 = vld [vmem:[#allocation3 + $0x30] sm:$0xfc]
  %v971 = vld [vmem:[#allocation3 + $0x38] sm:$0xfc]
  %v972 = vld [vmem:[#allocation3 + $0x50] sm:$0x3]
  %v973 = vld [vmem:[#allocation3 + $0x58] sm:$0x3]
  %vm982 = vcmask 1045504
  %v983 = vrot.slane %v966, 2
  %v984 = vrot.slane %v692, 2
  %v985 = vsel %vm982, %v983, %v984
  %v986 = vrot.slane %v967, 2
  %v987 = vrot.slane %v693, 2
  %v988 = vsel %vm982, %v986, %v987
  %v989 = vrot.slane %v968, 2
  %v990 = vsel %vm982, %v984, %v989
  %v991 = vrot.slane %v969, 2
  %v992 = vsel %vm982, %v987, %v991
  %v993 = vrot.slane %v970, 2
  %v994 = vrot.slane %v696, 2
  %v995 = vsel %vm982, %v993, %v994
  %v996 = vrot.slane %v971, 2
  %v997 = vrot.slane %v697, 2
  %v998 = vsel %vm982, %v996, %v997
  %v999 = vrot.slane %v972, 2
  %v1000 = vsel %vm982, %v994, %v999
  %v1001 = vrot.slane %v973, 2
  %v1002 = vsel %vm982, %v997, %v1001
  %s1007 = scalar_lea.vmem %s5, 272
  %v1008 = vld [vmem:[%s1007] sm:$0xff]
  %v1009 = vld [vmem:[%s1007 + $0x8] sm:$0xff]
  %v1010 = vld [vmem:[%s1007 + $0x10] sm:$0xff]
  %v1011 = vld [vmem:[%s1007 + $0x18] sm:$0xff]
  %v1012 = vld [vmem:[%s1007 + $0x20] sm:$0xff]
  %v1013 = vld [vmem:[%s1007 + $0x28] sm:$0xff]
  %v1014 = vld [vmem:[%s1007 + $0x30] sm:$0xff]
  %v1015 = vld [vmem:[%s1007 + $0x38] sm:$0xff]
  %v1016 = vld [vmem:[%s1007 + $0x40] sm:$0xff]
  %v1017 = vld [vmem:[%s1007 + $0x48] sm:$0xff]
  %v1018 = vld [vmem:[%s1007 + $0x50] sm:$0xff]
  %v1019 = vld [vmem:[%s1007 + $0x58] sm:$0xff]
  %v1020 = vld [vmem:[%s1007 + $0x60] sm:$0xff]
  %v1021 = vld [vmem:[%s1007 + $0x68] sm:$0xff]
  %v1022 = vld [vmem:[%s1007 + $0x70] sm:$0xff]
  %v1023 = vld [vmem:[%s1007 + $0x78] sm:$0xff]
  %v1024 = vld [vmem:[%s1007 + $0x80] sm:$0xff]
  %v1025 = vsel %vm659, %v988, 0
  %v1027 = vsel %vm659, %v992, 0
  %v1029 = vsel %vm659, %v998, 0
  %v1031 = vsel %vm659, %v1002, 0
  %1033 = vmatprep.subr.mxu0 0.0
  %1034 = vmatpush1.msra.mxu0 %v1023
  %1035 = vmatprep.subr.mxu0 0.0
  %1036 = vmatpush1.msra.mxu0 %v1022
  %1037 = vmatprep.subr.mxu0 0.0
  %1038 = vmatpush1.msra.mxu0 %v1021
  %1039 = vmatprep.subr.mxu0 0.0
  %1040 = vmatpush1.msra.mxu0 %v1020
  %1041 = vmatprep.subr.mxu0 0.0
  %1042 = vmatpush1.msra.mxu0 %v1019
  %1043 = vmatprep.subr.mxu0 0.0
  %1044 = vmatpush1.msra.mxu0 %v1018
  %1045 = vmatprep.subr.mxu0 0.0
  %1046 = vmatpush1.msra.mxu0 %v1017
  %1047 = vmatprep.subr.mxu0 0.0
  %1048 = vmatpush1.msra.mxu0 %v1016
  %1049 = vmatprep.subr.mxu0 0.0
  %1050 = vmatpush1.msra.mxu0 %v1015
  %1051 = vmatprep.subr.mxu0 0.0
  %1052 = vmatpush1.msra.mxu0 %v1014
  %1053 = vmatprep.subr.mxu0 0.0
  %1054 = vmatpush1.msra.mxu0 %v1013
  %1055 = vmatprep.subr.mxu0 0.0
  %1056 = vmatpush1.msra.mxu0 %v1012
  %1057 = vmatprep.subr.mxu0 0.0
  %1058 = vmatpush1.msra.mxu0 %v1011
  %1059 = vmatprep.subr.mxu0 0.0
  %1060 = vmatpush1.msra.mxu0 %v1010
  %1061 = vmatprep.subr.mxu0 0.0
  %1062 = vmatpush1.msra.mxu0 %v1009
  %1063 = vmatprep.subr.mxu0 0.0
  %1064 = vmatpush1.msra.mxu0 %v1008
  %1065 = vmatprep.subr.mxu0 0.0
  %1066 = vmatpush2.msra.mxu0 0.0
  %1067 = vmatprep.subr.mxu0 0.0
  %1068 = vmatpush2.msra.mxu0 0.0
  %1069 = vmatprep.subr.mxu0 0.0
  %1070 = vmatpush2.msra.mxu0 0.0
  %1071 = vmatprep.subr.mxu0 0.0
  %1072 = vmatpush2.msra.mxu0 0.0
  %1073 = vmatprep.subr.mxu0 0.0
  %1074 = vmatpush2.msra.mxu0 0.0
  %1075 = vmatprep.subr.mxu0 0.0
  %1076 = vmatpush2.msra.mxu0 0.0
  %1077 = vmatprep.subr.mxu0 0.0
  %1078 = vmatpush2.msra.mxu0 0.0
  %1079 = vmatprep.subr.mxu0 0.0
  %1080 = vmatpush2.msra.mxu0 0.0
  %1081 = vmatprep.subr.mxu0 0.0
  %1082 = vmatpush2.msra.mxu0 0.0
  %1083 = vmatprep.subr.mxu0 0.0
  %1084 = vmatpush2.msra.mxu0 0.0
  %1085 = vmatprep.subr.mxu0 0.0
  %1086 = vmatpush2.msra.mxu0 0.0
  %1087 = vmatprep.subr.mxu0 0.0
  %1088 = vmatpush2.msra.mxu0 0.0
  %1089 = vmatprep.subr.mxu0 0.0
  %1090 = vmatpush2.msra.mxu0 0.0
  %1091 = vmatprep.subr.mxu0 0.0
  %1092 = vmatpush2.msra.mxu0 0.0
  %1093 = vmatprep.subr.mxu0 0.0
  %1094 = vmatpush2.msra.mxu0 0.0
  %1095 = vmatprep.subr.mxu0 0.0
  %1096 = vmatpush2.msra.mxu0 %v1024
  %1097 = vmatprep.mubr.f32.mxu0 %v1025
  %1098 = vmatmul.mubr.f32.gmra.mxu0 %v985
  %v1099 = vpop.f32.mrf.mxu0
  %v1100 = vadd.f32 0.0, %v1099
  %v1101 = vpop.f32.mrf.mxu0
  %1102 = vmatprep.mubr.f32.mxu0 %v1027
  %1103 = vmatmul.mubr.f32.gmra.mxu0 %v990
  %v1104 = vpop.f32.mrf.mxu0
  %v1105 = vadd.f32 0.0, %v1104
  %v1106 = vpop.f32.mrf.mxu0
  %1107 = vmatprep.mubr.f32.mxu0 %v1029
  %1108 = vmatmul.mubr.f32.gmra.mxu0 %v995
  %v1109 = vpop.f32.mrf.mxu0
  %v1110 = vadd.f32 0.0, %v1109
  %v1111 = vpop.f32.mrf.mxu0
  %1112 = vmatprep.mubr.f32.mxu0 %v1031
  %1113 = vmatmul.mubr.f32.gmra.mxu0 %v1000
  %v1114 = vpop.f32.mrf.mxu0
  %v1115 = vadd.f32 0.0, %v1114
  %v1116 = vpop.f32.mrf.mxu0
  %1117 = vdwg.mxu0
  %v1118 = vadd.f32 %v948, %v1100
  %v1119 = vadd.f32 %v953, %v1105
  %v1120 = vadd.f32 %v958, %v1110
  %v1121 = vadd.f32 %v963, %v1115
  %v1122 = vld [vmem:[%s6] sm:$0xff]
  %v1123 = vld [vmem:[%s6 + $0x8] sm:$0xff]
  %v1124 = vld [vmem:[%s6 + $0x10] sm:$0xff]
  %v1125 = vld [vmem:[%s6 + $0x18] sm:$0xff]
  %v1126 = vld [vmem:[%s6 + $0x20] sm:$0xff]
  %v1127 = vld [vmem:[%s6 + $0x28] sm:$0xff]
  %v1128 = vld [vmem:[%s6 + $0x30] sm:$0xff]
  %v1129 = vld [vmem:[%s6 + $0x38] sm:$0xff]
  %v1130 = vld [vmem:[%s6 + $0x40] sm:$0xff]
  %v1131 = vld [vmem:[%s6 + $0x48] sm:$0xff]
  %v1132 = vld [vmem:[%s6 + $0x50] sm:$0xff]
  %v1133 = vld [vmem:[%s6 + $0x58] sm:$0xff]
  %v1134 = vld [vmem:[%s6 + $0x60] sm:$0xff]
  %v1135 = vld [vmem:[%s6 + $0x68] sm:$0xff]
  %v1136 = vld [vmem:[%s6 + $0x70] sm:$0xff]
  %v1137 = vld [vmem:[%s6 + $0x78] sm:$0xff]
  %v1138 = vld [vmem:[%s7] sm:$0x1]
  %v1139 = vld [vmem:[%s8] sm:$0x1]
  %1140 = vmatprep.subr.mxu0 0.0
  %1141 = vmatpush1.msra.mxu0 %v1137
  %1142 = vmatprep.subr.mxu0 0.0
  %1143 = vmatpush1.msra.mxu0 %v1136
  %1144 = vmatprep.subr.mxu0 0.0
  %1145 = vmatpush1.msra.mxu0 %v1135
  %1146 = vmatprep.subr.mxu0 0.0
  %1147 = vmatpush1.msra.mxu0 %v1134
  %1148 = vmatprep.subr.mxu0 0.0
  %1149 = vmatpush1.msra.mxu0 %v1133
  %1150 = vmatprep.subr.mxu0 0.0
  %1151 = vmatpush1.msra.mxu0 %v1132
  %1152 = vmatprep.subr.mxu0 0.0
  %1153 = vmatpush1.msra.mxu0 %v1131
  %1154 = vmatprep.subr.mxu0 0.0
  %1155 = vmatpush1.msra.mxu0 %v1130
  %1156 = vmatprep.subr.mxu0 0.0
  %1157 = vmatpush1.msra.mxu0 %v1129
  %1158 = vmatprep.subr.mxu0 0.0
  %1159 = vmatpush1.msra.mxu0 %v1128
  %1160 = vmatprep.subr.mxu0 0.0
  %1161 = vmatpush1.msra.mxu0 %v1127
  %1162 = vmatprep.subr.mxu0 0.0
  %1163 = vmatpush1.msra.mxu0 %v1126
  %1164 = vmatprep.subr.mxu0 0.0
  %1165 = vmatpush1.msra.mxu0 %v1125
  %1166 = vmatprep.subr.mxu0 0.0
  %1167 = vmatpush1.msra.mxu0 %v1124
  %1168 = vmatprep.subr.mxu0 0.0
  %1169 = vmatpush1.msra.mxu0 %v1123
  %1170 = vmatprep.subr.mxu0 0.0
  %1171 = vmatpush1.msra.mxu0 %v1122
  %1172 = vmatprep.subr.mxu0 0.0
  %1173 = vmatpush2.msra.mxu0 0.0
  %1174 = vmatprep.subr.mxu0 0.0
  %1175 = vmatpush2.msra.mxu0 0.0
  %1176 = vmatprep.subr.mxu0 0.0
  %1177 = vmatpush2.msra.mxu0 0.0
  %1178 = vmatprep.subr.mxu0 0.0
  %1179 = vmatpush2.msra.mxu0 0.0
  %1180 = vmatprep.subr.mxu0 0.0
  %1181 = vmatpush2.msra.mxu0 0.0
  %1182 = vmatprep.subr.mxu0 0.0
  %1183 = vmatpush2.msra.mxu0 0.0
  %1184 = vmatprep.subr.mxu0 0.0
  %1185 = vmatpush2.msra.mxu0 0.0
  %1186 = vmatprep.subr.mxu0 0.0
  %1187 = vmatpush2.msra.mxu0 0.0
  %1188 = vmatprep.subr.mxu0 0.0
  %1189 = vmatpush2.msra.mxu0 0.0
  %1190 = vmatprep.subr.mxu0 0.0
  %1191 = vmatpush2.msra.mxu0 0.0
  %1192 = vmatprep.subr.mxu0 0.0
  %1193 = vmatpush2.msra.mxu0 0.0
  %1194 = vmatprep.subr.mxu0 0.0
  %1195 = vmatpush2.msra.mxu0 0.0
  %1196 = vmatprep.subr.mxu0 0.0
  %1197 = vmatpush2.msra.mxu0 0.0
  %1198 = vmatprep.subr.mxu0 0.0
  %1199 = vmatpush2.msra.mxu0 0.0
  %1200 = vmatprep.subr.mxu0 0.0
  %1201 = vmatpush2.msra.mxu0 0.0
  %1202 = vmatprep.subr.mxu0 0.0
  %1203 = vmatpush2.msra.mxu0 0.0
  %1204 = vmatprep.mubr.f32.mxu0 0.0
  %1205 = vmatmul.mubr.f32.gmra.mxu0 %v1118
  %v1206 = vpop.f32.mrf.mxu0
  %v1207 = vadd.f32 0.0, %v1206
  %v1208 = vpop.f32.mrf.mxu0
  %1209 = vmatprep.mubr.f32.mxu0 0.0
  %1210 = vmatmul.mubr.f32.gmra.mxu0 %v1119
  %v1211 = vpop.f32.mrf.mxu0
  %v1212 = vadd.f32 0.0, %v1211
  %v1213 = vpop.f32.mrf.mxu0
  %1214 = vmatprep.mubr.f32.mxu0 0.0
  %1215 = vmatmul.mubr.f32.gmra.mxu0 %v1120
  %v1216 = vpop.f32.mrf.mxu0
  %v1217 = vadd.f32 0.0, %v1216
  %v1218 = vpop.f32.mrf.mxu0
  %1219 = vmatprep.mubr.f32.mxu0 0.0
  %1220 = vmatmul.mubr.f32.gmra.mxu0 %v1121
  %v1221 = vpop.f32.mrf.mxu0
  %v1222 = vadd.f32 0.0, %v1221
  %v1223 = vpop.f32.mrf.mxu0
  %1224 = vdwg.mxu0
  %v1225 = vadd.f32 %v1207, %v1212
  %v1226 = vadd.f32 %v1225, %v1217
  %v1227 = vadd.f32 %v1226, %v1222
  %v1228 = vrot.slane %v1227, 4
  %v1229 = vadd.f32 %v1227, %v1228
  %v1230 = vrot.slane %v1229, 2
  %v1231 = vadd.f32 %v1229, %v1230
  %v1232 = vrot.slane %v1231, 1
  %v1233 = vadd.f32 %v1231, %v1232
  %v1234 = vmul.f32 %v1233, 0.001953125
  %v1235 = vmul.f32 %v1118, %v1118
  %v1236 = vmul.f32 %v1119, %v1119
  %v1237 = vmul.f32 %v1120, %v1120
  %v1238 = vmul.f32 %v1121, %v1121
  %1239 = vmatprep.subr.mxu0 0.0
  %1240 = vmatpush1.msra.mxu0 %v1137
  %1241 = vmatprep.subr.mxu0 0.0
  %1242 = vmatpush1.msra.mxu0 %v1136
  %1243 = vmatprep.subr.mxu0 0.0
  %1244 = vmatpush1.msra.mxu0 %v1135
  %1245 = vmatprep.subr.mxu0 0.0
  %1246 = vmatpush1.msra.mxu0 %v1134
  %1247 = vmatprep.subr.mxu0 0.0
  %1248 = vmatpush1.msra.mxu0 %v1133
  %1249 = vmatprep.subr.mxu0 0.0
  %1250 = vmatpush1.msra.mxu0 %v1132
  %1251 = vmatprep.subr.mxu0 0.0
  %1252 = vmatpush1.msra.mxu0 %v1131
  %1253 = vmatprep.subr.mxu0 0.0
  %1254 = vmatpush1.msra.mxu0 %v1130
  %1255 = vmatprep.subr.mxu0 0.0
  %1256 = vmatpush1.msra.mxu0 %v1129
  %1257 = vmatprep.subr.mxu0 0.0
  %1258 = vmatpush1.msra.mxu0 %v1128
  %1259 = vmatprep.subr.mxu0 0.0
  %1260 = vmatpush1.msra.mxu0 %v1127
  %1261 = vmatprep.subr.mxu0 0.0
  %1262 = vmatpush1.msra.mxu0 %v1126
  %1263 = vmatprep.subr.mxu0 0.0
  %1264 = vmatpush1.msra.mxu0 %v1125
  %1265 = vmatprep.subr.mxu0 0.0
  %1266 = vmatpush1.msra.mxu0 %v1124
  %1267 = vmatprep.subr.mxu0 0.0
  %1268 = vmatpush1.msra.mxu0 %v1123
  %1269 = vmatprep.subr.mxu0 0.0
  %1270 = vmatpush1.msra.mxu0 %v1122
  %1271 = vmatprep.subr.mxu0 0.0
  %1272 = vmatpush2.msra.mxu0 0.0
  %1273 = vmatprep.subr.mxu0 0.0
  %1274 = vmatpush2.msra.mxu0 0.0
  %1275 = vmatprep.subr.mxu0 0.0
  %1276 = vmatpush2.msra.mxu0 0.0
  %1277 = vmatprep.subr.mxu0 0.0
  %1278 = vmatpush2.msra.mxu0 0.0
  %1279 = vmatprep.subr.mxu0 0.0
  %1280 = vmatpush2.msra.mxu0 0.0
  %1281 = vmatprep.subr.mxu0 0.0
  %1282 = vmatpush2.msra.mxu0 0.0
  %1283 = vmatprep.subr.mxu0 0.0
  %1284 = vmatpush2.msra.mxu0 0.0
  %1285 = vmatprep.subr.mxu0 0.0
  %1286 = vmatpush2.msra.mxu0 0.0
  %1287 = vmatprep.subr.mxu0 0.0
  %1288 = vmatpush2.msra.mxu0 0.0
  %1289 = vmatprep.subr.mxu0 0.0
  %1290 = vmatpush2.msra.mxu0 0.0
  %1291 = vmatprep.subr.mxu0 0.0
  %1292 = vmatpush2.msra.mxu0 0.0
  %1293 = vmatprep.subr.mxu0 0.0
  %1294 = vmatpush2.msra.mxu0 0.0
  %1295 = vmatprep.subr.mxu0 0.0
  %1296 = vmatpush2.msra.mxu0 0.0
  %1297 = vmatprep.subr.mxu0 0.0
  %1298 = vmatpush2.msra.mxu0 0.0
  %1299 = vmatprep.subr.mxu0 0.0
  %1300 = vmatpush2.msra.mxu0 0.0
  %1301 = vmatprep.subr.mxu0 0.0
  %1302 = vmatpush2.msra.mxu0 0.0
  %1303 = vmatprep.mubr.f32.mxu0 0.0
  %1304 = vmatmul.mubr.f32.gmra.mxu0 %v1235
  %v1305 = vpop.f32.mrf.mxu0
  %v1306 = vadd.f32 0.0, %v1305
  %v1307 = vpop.f32.mrf.mxu0
  %1308 = vmatprep.mubr.f32.mxu0 0.0
  %1309 = vmatmul.mubr.f32.gmra.mxu0 %v1236
  %v1310 = vpop.f32.mrf.mxu0
  %v1311 = vadd.f32 0.0, %v1310
  %v1312 = vpop.f32.mrf.mxu0
  %1313 = vmatprep.mubr.f32.mxu0 0.0
  %1314 = vmatmul.mubr.f32.gmra.mxu0 %v1237
  %v1315 = vpop.f32.mrf.mxu0
  %v1316 = vadd.f32 0.0, %v1315
  %v1317 = vpop.f32.mrf.mxu0
  %1318 = vmatprep.mubr.f32.mxu0 0.0
  %1319 = vmatmul.mubr.f32.gmra.mxu0 %v1238
  %v1320 = vpop.f32.mrf.mxu0
  %v1321 = vadd.f32 0.0, %v1320
  %v1322 = vpop.f32.mrf.mxu0
  %1323 = vdwg.mxu0
  %v1324 = vadd.f32 %v1306, %v1311
  %v1325 = vadd.f32 %v1324, %v1316
  %v1326 = vadd.f32 %v1325, %v1321
  %v1327 = vrot.slane %v1326, 4
  %v1328 = vadd.f32 %v1326, %v1327
  %v1329 = vrot.slane %v1328, 2
  %v1330 = vadd.f32 %v1328, %v1329
  %v1331 = vrot.slane %v1330, 1
  %v1332 = vadd.f32 %v1330, %v1331
  %v1333 = vmul.f32 %v1332, 0.001953125
  %v1334 = vmul.f32 %v1234, %v1234
  %v1335 = vsub.f32 %v1333, %v1334
  %v1336 = vadd.f32 %v1335, 1e-05
  %v1337 = vrsqrt.pop %v1336
  %v1338 = vmul.f32 %v1138, %v1337
  %v1339 = vmul.f32 %v1234, %v1338
  %v1340 = vsub.f32 %v1139, %v1339
  %v1342 = vlaneseq
  %v1343 = vshrl.u32 %v1342, 7
  %v1344 = vsub.s32 0, %v1343
  %v1345 = vrot.slane %v1338, %v1344
  %v1347 = vmul.f32 %v1118, %v1345
  %v1348 = vmul.f32 %v1119, %v1345
  %v1349 = vmul.f32 %v1120, %v1345
  %v1350 = vmul.f32 %v1121, %v1345
  %v1352 = vlaneseq
  %v1353 = vshrl.u32 %v1352, 7
  %v1354 = vsub.s32 0, %v1353
  %v1355 = vrot.slane %v1340, %v1354
  %v1357 = vadd.f32 %v1347, %v1355
  %v1358 = vadd.f32 %v1348, %v1355
  %v1359 = vadd.f32 %v1349, %v1355
  %v1360 = vadd.f32 %v1350, %v1355
  %v1361 = vmax.f32 %v1357, 0.0
  %v1362 = vmax.f32 %v1358, 0.0
  %v1363 = vmax.f32 %v1359, 0.0
  %v1364 = vmax.f32 %v1360, 0.0
  %1365 = vst [vmem:[%s9] sm:$0xff] %v1361
  %1366 = vst [vmem:[%s9 + $0x8] sm:$0xff] %v1362
  %1367 = vst [vmem:[%s9 + $0x10] sm:$0xff] %v1363
  %1368 = vst [vmem:[%s9 + $0x18] sm:$0xff] %v1364
  // Predicated region
  $region38: #{double_conv.1} parent=0 // pred_check
    _
  $region39: #{double_conv.1} parent=0 // pred_check_branch
    %1370 = sbr.rel (0) target = $region41
  $region40: #{double_conv.1} parent=0 // pred_region
    _
  $region41: #{double_conv.1} parent=0 // pred_fallthru
    _
  // Predicated region
  $region42: #{double_conv.1} parent=0 // pred_check
    _
  $region43: #{double_conv.1} parent=0 // pred_check_branch
    %1372 = sbr.rel (0) target = $region45
  $region44: #{double_conv.1} parent=0 // pred_region
    _
  $region45: #{double_conv.1} parent=0 // pred_fallthru
    _

</llo_original>
